<compile_context>
chip_gen: v5e
topology: v5e:2x2
jax: 0.10.0
libtpu: 0.0.40
codegen_flags: <defaults>
</compile_context>

<pallas_src>
import jax
import jax.numpy as jnp
from jax import lax
from jax.experimental import pallas as pl
from jax.experimental.pallas import tpu as pltpu


def rwkv_attention_kernel(x_ref, wk_ref, bk_ref, wv_ref, bv_ref,
                          u_ref, w_ref, wo_ref, bo_ref, out_ref,
                          k_sc, v_sc, o_sc, a_ref, b_ref):
    s_chunk = pl.program_id(1)
    bn, bs, D = x_ref.shape
    dn = (((2,), (0,)), ((), ()))            # contract D with the weight's in-axis

    # (bn, bs, D) -> time-major (bs, bn, D): per-tile VMEM re-layout instead of
    # a wrapper-side HBM transpose pass.
    x_t = jnp.transpose(x_ref[...], (1, 0, 2))
    x_mm = x_t.astype(wk_ref.dtype)          # bf16 operands, f32 accumulation

    # K / V projections (MXU), results kept f32 in time-major scratch.
    k_sc[...] = lax.dot_general(x_mm, wk_ref[...], dn,
                                preferred_element_type=jnp.float32) + bk_ref[...]
    v_sc[...] = lax.dot_general(x_mm, wv_ref[...], dn,
                                preferred_element_type=jnp.float32) + bv_ref[...]

    # State init from the first timestep of the whole sequence (torch builds
    # a, b from t == 0, then also processes t == 0 inside the loop).
    @pl.when(s_chunk == 0)
    def _init_state():
        ek0 = jnp.exp(k_sc[0])               # (bn, D)
        a_ref[...] = ek0 * v_sc[0]
        b_ref[...] = ek0

    # Hoisted exps + broadcasts (done once per tile, not per timestep).
    exp_u = pl.broadcast_to(jnp.exp(u_ref[...]), (bn, D))
    decay = pl.broadcast_to(jnp.exp(-w_ref[...]), (bn, D))

    def body(t, carry):
        a, b = carry
        k_t = k_sc[t]                        # (bn, D)
        v_t = v_sc[t]
        ek = jnp.exp(k_t)                    # single exp per timestep (EUP)
        eku = exp_u * ek                     # == exp(u + k_t); VPU mul is cheap
        denom = b + eku
        inv = pl.reciprocal(denom, approx=True)
        inv = inv * (2.0 - denom * inv)      # one Newton step -> ~f32 accuracy
        o_sc[t] = (a + eku * v_t) * inv
        a = decay * a + ek * v_t
        b = decay * b + ek
        return a, b

    a_fin, b_fin = lax.fori_loop(0, bs, body, (a_ref[...], b_ref[...]),
                                 unroll=min(8, bs))
    a_ref[...] = a_fin                       # carry the state to the next S-chunk
    b_ref[...] = b_fin

    # Output projection for this chunk (MXU), written straight to out_ref.
    out = lax.dot_general(o_sc[...].astype(wo_ref.dtype), wo_ref[...], dn,
                          preferred_element_type=jnp.float32) + bo_ref[...]
    out_ref[...] = jnp.transpose(out, (1, 0, 2)).astype(out_ref.dtype)


def _pick_block(n, candidates):
    for c in candidates:
        if n % c == 0:
            return c
    return n


def rwkv_attention(x, params, *, block_n=None, block_s=None,
                   matmul_dtype=jnp.bfloat16):
    """x: (N, S, D) float32 -> (N, S, D) float32."""
    N, S, D = x.shape
    if block_n is None:
        block_n = _pick_block(N, (8, 4, 2, 1))
    if block_s is None:
        block_s = _pick_block(S, (128, 64, 32, 16, 8))
    assert N % block_n == 0 and S % block_s == 0
    # Mosaic block constraint: second-minor block dim multiple of 8 or full.
    assert block_s % 8 == 0 or block_s == S
    # TODO(synk): for D not a multiple of 128 (e.g. this D=32 toy case), pad D
    # to 128 on the lane axis for lane-dense stores / fuller MXU contraction.

    x = x.astype(jnp.float32)
    wk_t = params["wk"].T.astype(matmul_dtype)          # (D_in, D_out)
    wv_t = params["wv"].T.astype(matmul_dtype)
    wo_t = params["wo"].T.astype(matmul_dtype)
    bk = params["bk"].reshape(1, D).astype(jnp.float32)
    bv = params["bv"].reshape(1, D).astype(jnp.float32)
    bo = params["bo"].reshape(1, D).astype(jnp.float32)
    u_flat = params["u_rwkv"].reshape(1, D).astype(jnp.float32)  # (H,Hd)->(1,D)
    w_flat = params["w_rwkv"].reshape(1, D).astype(jnp.float32)

    grid = (N // block_n, S // block_s)
    resident = lambda n, s: (0, 0)           # constant block -> stays VMEM-resident

    grid_spec = pltpu.PrefetchScalarGridSpec(
        num_scalar_prefetch=0,
        grid=grid,
        in_specs=[
            pl.BlockSpec((block_n, block_s, D), lambda n, s: (n, s, 0)),  # x
            pl.BlockSpec((D, D), resident),                               # wk
            pl.BlockSpec((1, D), resident),                               # bk
            pl.BlockSpec((D, D), resident),                               # wv
            pl.BlockSpec((1, D), resident),                               # bv
            pl.BlockSpec((1, D), resident),                               # u
            pl.BlockSpec((1, D), resident),                               # w
            pl.BlockSpec((D, D), resident),                               # wo
            pl.BlockSpec((1, D), resident),                               # bo
        ],
        out_specs=pl.BlockSpec((block_n, block_s, D), lambda n, s: (n, s, 0)),
        scratch_shapes=[
            pltpu.VMEM((block_s, block_n, D), jnp.float32),   # k (time-major)
            pltpu.VMEM((block_s, block_n, D), jnp.float32),   # v (time-major)
            pltpu.VMEM((block_s, block_n, D), jnp.float32),   # o (time-major)
            pltpu.VMEM((block_n, D), jnp.float32),            # carried a
            pltpu.VMEM((block_n, D), jnp.float32),            # carried b
        ],
    )

    return pl.pallas_call(
        rwkv_attention_kernel,
        out_shape=jax.ShapeDtypeStruct((N, S, D), jnp.float32),
        grid_spec=grid_spec,
        compiler_params=pltpu.CompilerParams(
            dimension_semantics=("parallel", "arbitrary")),
    )(x, wk_t, bk, wv_t, bv, u_flat, w_flat, wo_t, bo)


def rwkv_attention_ref(x, params, heads, matmul_dtype=jnp.float32):
    """Pure-JAX reference mirroring the PyTorch forward.

    matmul_dtype lets the reference use the same bf16-operand / f32-accumulate
    matmuls as the kernel for a tight apples-to-apples comparison.
    """
    N, S, D = x.shape
    md = matmul_dtype
    dn = (((2,), (0,)), ((), ()))

    def proj(inp, w, b):
        y = lax.dot_general(inp.astype(md), w.T.astype(md), dn,
                            preferred_element_type=jnp.float32)
        return y + b

    k = proj(x, params["wk"], params["bk"])          # (N, S, D)
    v = proj(x, params["wv"], params["bv"])
    u = params["u_rwkv"].reshape(-1)                 # (D,)
    w = params["w_rwkv"].reshape(-1)

    a = jnp.exp(k[:, 0]) * v[:, 0]
    b = jnp.exp(k[:, 0])
    outs = []
    for t in range(S):
        eku = jnp.exp(u[None] + k[:, t])
        outs.append((a + eku * v[:, t]) / (b + eku))
        ek = jnp.exp(k[:, t])
        a = jnp.exp(-w)[None] * a + ek * v[:, t]
        b = jnp.exp(-w)[None] * b + ek
    o = jnp.stack(outs, axis=1)                      # (N, S, D)
    return proj(o, params["wo"], params["bo"])


def init_params(key, dim, heads):
    head_dim = dim // heads
    ks = jax.random.split(key, 8)
    return {
        "wk": 0.1 * jax.random.normal(ks[0], (dim, dim), jnp.float32),
        "bk": 0.01 * jax.random.normal(ks[1], (dim,), jnp.float32),
        "wv": 0.1 * jax.random.normal(ks[2], (dim, dim), jnp.float32),
        "bv": 0.01 * jax.random.normal(ks[3], (dim,), jnp.float32),
        "wo": 0.1 * jax.random.normal(ks[4], (dim, dim), jnp.float32),
        "bo": 0.01 * jax.random.normal(ks[5], (dim,), jnp.float32),
        "w_rwkv": 0.5 * jax.random.uniform(ks[6], (heads, head_dim), jnp.float32),
        "u_rwkv": 0.5 * jax.random.uniform(ks[7], (heads, head_dim), jnp.float32),
    }


if __name__ == "__main__":
    # Small shapes; seq_len=16 with block_s=8 / block_n=1 gives a (2, 2) grid
    # so both the parallel batch axis and the carried S-chunk recurrence are
    # exercised.
    batch, seq_len, dim, heads = 2, 16, 32, 8

    key = jax.random.PRNGKey(0)
    k_x, k_p = jax.random.split(key)
    x = jax.random.normal(k_x, (batch, seq_len, dim), jnp.float32)
    params = init_params(k_p, dim, heads)

    out = jax.block_until_ready(
        rwkv_attention(x, params, block_n=1, block_s=8))
    assert out.shape == (batch, seq_len, dim)

    # Tight check against a reference using the same bf16-operand matmuls
    # (validates the grid/carry/recurrence structure exactly).
    ref_mm = rwkv_attention_ref(x, params, heads, matmul_dtype=jnp.bfloat16)
    err_mm = float(jnp.max(jnp.abs(out - ref_mm)))
    assert jnp.allclose(out, ref_mm, rtol=2e-3, atol=2e-3), f"max err {err_mm}"

    # Loose check against the pure-f32 reference (bf16 matmul operand error).
    ref_f32 = rwkv_attention_ref(x, params, heads)
    err_f32 = float(jnp.max(jnp.abs(out - ref_f32)))
    assert jnp.allclose(out, ref_f32, rtol=5e-2, atol=5e-2), f"max err {err_f32}"

    print("KERNEL_OK")
</pallas_src>

<mosaic_0001>
module attributes {stable_mosaic.version = 11 : i64} {
  func.func @rwkv_attention_kernel(%arg0: i32, %arg1: i32, %arg2: memref<1x8x32xf32, #tpu.memory_space<vmem>>, %arg3: memref<32x32xbf16, #tpu.memory_space<vmem>>, %arg4: memref<1x32xf32, #tpu.memory_space<vmem>>, %arg5: memref<32x32xbf16, #tpu.memory_space<vmem>>, %arg6: memref<1x32xf32, #tpu.memory_space<vmem>>, %arg7: memref<1x32xf32, #tpu.memory_space<vmem>>, %arg8: memref<1x32xf32, #tpu.memory_space<vmem>>, %arg9: memref<32x32xbf16, #tpu.memory_space<vmem>>, %arg10: memref<1x32xf32, #tpu.memory_space<vmem>>, %arg11: memref<1x8x32xf32, #tpu.memory_space<vmem>>, %arg12: memref<8x1x32xf32, #tpu.memory_space<vmem>>, %arg13: memref<8x1x32xf32, #tpu.memory_space<vmem>>, %arg14: memref<8x1x32xf32, #tpu.memory_space<vmem>>, %arg15: memref<1x32xf32, #tpu.memory_space<vmem>>, %arg16: memref<1x32xf32, #tpu.memory_space<vmem>>) attributes {dimension_semantics = [#tpu.dimension_semantics<parallel>, #tpu.dimension_semantics<arbitrary>], iteration_bounds = array<i64: 2, 2>, scalar_prefetch = 0 : i64, scratch_operands = 5 : i64, tpu.core_type = #tpu.core_type<tc>, window_params = [{transform_indices = @transform_0, window_bounds = array<i64: 1, 8, 32>}, {pipeline_mode = #tpu.pipeline_mode<synchronous>, transform_indices = @transform_1, window_bounds = array<i64: 32, 32>}, {pipeline_mode = #tpu.pipeline_mode<synchronous>, transform_indices = @transform_2, window_bounds = array<i64: 1, 32>}, {pipeline_mode = #tpu.pipeline_mode<synchronous>, transform_indices = @transform_3, window_bounds = array<i64: 32, 32>}, {pipeline_mode = #tpu.pipeline_mode<synchronous>, transform_indices = @transform_4, window_bounds = array<i64: 1, 32>}, {pipeline_mode = #tpu.pipeline_mode<synchronous>, transform_indices = @transform_5, window_bounds = array<i64: 1, 32>}, {pipeline_mode = #tpu.pipeline_mode<synchronous>, transform_indices = @transform_6, window_bounds = array<i64: 1, 32>}, {pipeline_mode = #tpu.pipeline_mode<synchronous>, transform_indices = @transform_7, window_bounds = array<i64: 32, 32>}, {pipeline_mode = #tpu.pipeline_mode<synchronous>, transform_indices = @transform_8, window_bounds = array<i64: 1, 32>}, {transform_indices = @transform_9, window_bounds = array<i64: 1, 8, 32>}]} {
    %c0 = arith.constant 0 : index
    %c0_0 = arith.constant 0 : index
    %c0_1 = arith.constant 0 : index
    %0 = vector.load %arg2[%c0, %c0_0, %c0_1] : memref<1x8x32xf32, #tpu.memory_space<vmem>>, vector<1x8x32xf32>
    %1 = tpu.transpose %0, [1, 0, 2] : vector<1x8x32xf32> -> vector<8x1x32xf32>
    %2 = arith.truncf %1 : vector<8x1x32xf32> to vector<8x1x32xbf16>
    %c0_2 = arith.constant 0 : index
    %c0_3 = arith.constant 0 : index
    %3 = vector.load %arg3[%c0_2, %c0_3] : memref<32x32xbf16, #tpu.memory_space<vmem>>, vector<32x32xbf16>
    %cst = arith.constant dense<0.000000e+00> : vector<8x1x32xf32>
    %4 = tpu.matmul %2, %3, %cst {dimension_numbers = #tpu.dot_dimension_numbers<[2], [0], [0, 1], [1], [0, 0, 0, 1, 1, 1], [], []>} : vector<8x1x32xbf16>, vector<32x32xbf16>, vector<8x1x32xf32> -> vector<8x1x32xf32>
    %c0_4 = arith.constant 0 : index
    %c0_5 = arith.constant 0 : index
    %5 = vector.load %arg4[%c0_4, %c0_5] : memref<1x32xf32, #tpu.memory_space<vmem>>, vector<1x32xf32>
    %6 = vector.shape_cast %5 : vector<1x32xf32> to vector<1x1x32xf32>
    %7 = vector.broadcast %6 : vector<1x1x32xf32> to vector<8x1x32xf32>
    %8 = arith.addf %4, %7 : vector<8x1x32xf32>
    %c0_6 = arith.constant 0 : index
    %c0_7 = arith.constant 0 : index
    %c0_8 = arith.constant 0 : index
    %9 = vector.load %arg12[%c0_6, %c0_7, %c0_8] : memref<8x1x32xf32, #tpu.memory_space<vmem>>, vector<8x1x32xf32>
    tpu.vector_store %arg12[%c0_6, %c0_7, %c0_8], %8 {strides = array<i32>} : memref<8x1x32xf32, #tpu.memory_space<vmem>>, vector<8x1x32xf32>,
    %c0_9 = arith.constant 0 : index
    %c0_10 = arith.constant 0 : index
    %10 = vector.load %arg5[%c0_9, %c0_10] : memref<32x32xbf16, #tpu.memory_space<vmem>>, vector<32x32xbf16>
    %cst_11 = arith.constant dense<0.000000e+00> : vector<8x1x32xf32>
    %11 = tpu.matmul %2, %10, %cst_11 {dimension_numbers = #tpu.dot_dimension_numbers<[2], [0], [0, 1], [1], [0, 0, 0, 1, 1, 1], [], []>} : vector<8x1x32xbf16>, vector<32x32xbf16>, vector<8x1x32xf32> -> vector<8x1x32xf32>
    %c0_12 = arith.constant 0 : index
    %c0_13 = arith.constant 0 : index
    %12 = vector.load %arg6[%c0_12, %c0_13] : memref<1x32xf32, #tpu.memory_space<vmem>>, vector<1x32xf32>
    %13 = vector.shape_cast %12 : vector<1x32xf32> to vector<1x1x32xf32>
    %14 = vector.broadcast %13 : vector<1x1x32xf32> to vector<8x1x32xf32>
    %15 = arith.addf %11, %14 : vector<8x1x32xf32>
    %c0_14 = arith.constant 0 : index
    %c0_15 = arith.constant 0 : index
    %c0_16 = arith.constant 0 : index
    %16 = vector.load %arg13[%c0_14, %c0_15, %c0_16] : memref<8x1x32xf32, #tpu.memory_space<vmem>>, vector<8x1x32xf32>
    tpu.vector_store %arg13[%c0_14, %c0_15, %c0_16], %15 {strides = array<i32>} : memref<8x1x32xf32, #tpu.memory_space<vmem>>, vector<8x1x32xf32>,
    %c0_i32 = arith.constant 0 : i32
    %17 = arith.cmpi eq, %arg1, %c0_i32 : i32
    %18 = arith.extui %17 : i1 to i32
    %c0_i32_17 = arith.constant 0 : i32
    %19 = arith.cmpi ne, %18, %c0_i32_17 : i32
    scf.if %19 {
      %c0_99 = arith.constant 0 : index
      %c0_100 = arith.constant 0 : index
      %c0_101 = arith.constant 0 : index
      %248 = vector.load %arg12[%c0_99, %c0_100, %c0_101] : memref<8x1x32xf32, #tpu.memory_space<vmem>>, vector<1x1x32xf32>
      %249 = vector.shape_cast %248 : vector<1x1x32xf32> to vector<1x32xf32>
      %250 = math.exp %249 : vector<1x32xf32>
      %c0_102 = arith.constant 0 : index
      %c0_103 = arith.constant 0 : index
      %c0_104 = arith.constant 0 : index
      %251 = vector.load %arg13[%c0_102, %c0_103, %c0_104] : memref<8x1x32xf32, #tpu.memory_space<vmem>>, vector<1x1x32xf32>
      %252 = vector.shape_cast %251 : vector<1x1x32xf32> to vector<1x32xf32>
      %253 = arith.mulf %250, %252 : vector<1x32xf32>
      %c0_105 = arith.constant 0 : index
      %c0_106 = arith.constant 0 : index
      %254 = vector.load %arg15[%c0_105, %c0_106] : memref<1x32xf32, #tpu.memory_space<vmem>>, vector<1x32xf32>
      tpu.vector_store %arg15[%c0_105, %c0_106], %253 {strides = array<i32>} : memref<1x32xf32, #tpu.memory_space<vmem>>, vector<1x32xf32>,
      %c0_107 = arith.constant 0 : index
      %c0_108 = arith.constant 0 : index
      %255 = vector.load %arg16[%c0_107, %c0_108] : memref<1x32xf32, #tpu.memory_space<vmem>>, vector<1x32xf32>
      tpu.vector_store %arg16[%c0_107, %c0_108], %250 {strides = array<i32>} : memref<1x32xf32, #tpu.memory_space<vmem>>, vector<1x32xf32>,
    } else {
    }
    %c0_18 = arith.constant 0 : index
    %c0_19 = arith.constant 0 : index
    %20 = vector.load %arg7[%c0_18, %c0_19] : memref<1x32xf32, #tpu.memory_space<vmem>>, vector<1x32xf32>
    %21 = math.exp %20 : vector<1x32xf32>
    %c0_20 = arith.constant 0 : index
    %c0_21 = arith.constant 0 : index
    %22 = vector.load %arg8[%c0_20, %c0_21] : memref<1x32xf32, #tpu.memory_space<vmem>>, vector<1x32xf32>
    %cst_22 = arith.constant 0.000000e+00 : f32
    %23 = vector.broadcast %cst_22 : f32 to vector<1x32xf32>
    %24 = arith.subf %23, %22 : vector<1x32xf32>
    %25 = math.exp %24 : vector<1x32xf32>
    %c0_23 = arith.constant 0 : index
    %c0_24 = arith.constant 0 : index
    %26 = vector.load %arg15[%c0_23, %c0_24] : memref<1x32xf32, #tpu.memory_space<vmem>>, vector<1x32xf32>
    %c0_25 = arith.constant 0 : index
    %c0_26 = arith.constant 0 : index
    %27 = vector.load %arg16[%c0_25, %c0_26] : memref<1x32xf32, #tpu.memory_space<vmem>>, vector<1x32xf32>
    %c0_i32_27 = arith.constant 0 : i32
    %28 = arith.index_cast %c0_i32_27 : i32 to index
    %c0_28 = arith.constant 0 : index
    %c0_29 = arith.constant 0 : index
    %29 = vector.load %arg12[%28, %c0_28, %c0_29] : memref<8x1x32xf32, #tpu.memory_space<vmem>>, vector<1x1x32xf32>
    %30 = vector.shape_cast %29 : vector<1x1x32xf32> to vector<1x32xf32>
    %31 = arith.index_cast %c0_i32_27 : i32 to index
    %c0_30 = arith.constant 0 : index
    %c0_31 = arith.constant 0 : index
    %32 = vector.load %arg13[%31, %c0_30, %c0_31] : memref<8x1x32xf32, #tpu.memory_space<vmem>>, vector<1x1x32xf32>
    %33 = vector.shape_cast %32 : vector<1x1x32xf32> to vector<1x32xf32>
    %34 = math.exp %30 : vector<1x32xf32>
    %35 = arith.mulf %21, %34 : vector<1x32xf32>
    %36 = arith.addf %27, %35 : vector<1x32xf32>
    %37 = tpu.reciprocal %36 {approx = true} : vector<1x32xf32> -> vector<1x32xf32>
    %38 = arith.mulf %36, %37 : vector<1x32xf32>
    %cst_32 = arith.constant 2.000000e+00 : f32
    %39 = vector.broadcast %cst_32 : f32 to vector<1x32xf32>
    %40 = arith.subf %39, %38 : vector<1x32xf32>
    %41 = arith.mulf %37, %40 : vector<1x32xf32>
    %42 = arith.mulf %35, %33 : vector<1x32xf32>
    %43 = arith.addf %26, %42 : vector<1x32xf32>
    %44 = arith.mulf %43, %41 : vector<1x32xf32>
    %45 = arith.index_cast %c0_i32_27 : i32 to index
    %c0_33 = arith.constant 0 : index
    %c0_34 = arith.constant 0 : index
    %46 = vector.load %arg14[%45, %c0_33, %c0_34] : memref<8x1x32xf32, #tpu.memory_space<vmem>>, vector<1x1x32xf32>
    %47 = vector.shape_cast %46 : vector<1x1x32xf32> to vector<1x32xf32>
    %48 = vector.shape_cast %44 : vector<1x32xf32> to vector<1x1x32xf32>
    tpu.vector_store %arg14[%45, %c0_33, %c0_34], %48 {strides = array<i32>} : memref<8x1x32xf32, #tpu.memory_space<vmem>>, vector<1x1x32xf32>,
    %49 = arith.mulf %25, %26 : vector<1x32xf32>
    %50 = arith.mulf %34, %33 : vector<1x32xf32>
    %51 = arith.addf %49, %50 : vector<1x32xf32>
    %52 = arith.mulf %25, %27 : vector<1x32xf32>
    %53 = arith.addf %52, %34 : vector<1x32xf32>
    %c1_i32 = arith.constant 1 : i32
    %54 = arith.index_cast %c1_i32 : i32 to index
    %c0_35 = arith.constant 0 : index
    %c0_36 = arith.constant 0 : index
    %55 = vector.load %arg12[%54, %c0_35, %c0_36] : memref<8x1x32xf32, #tpu.memory_space<vmem>>, vector<1x1x32xf32>
    %56 = vector.shape_cast %55 : vector<1x1x32xf32> to vector<1x32xf32>
    %57 = arith.index_cast %c1_i32 : i32 to index
    %c0_37 = arith.constant 0 : index
    %c0_38 = arith.constant 0 : index
    %58 = vector.load %arg13[%57, %c0_37, %c0_38] : memref<8x1x32xf32, #tpu.memory_space<vmem>>, vector<1x1x32xf32>
    %59 = vector.shape_cast %58 : vector<1x1x32xf32> to vector<1x32xf32>
    %60 = math.exp %56 : vector<1x32xf32>
    %61 = arith.mulf %21, %60 : vector<1x32xf32>
    %62 = arith.addf %53, %61 : vector<1x32xf32>
    %63 = tpu.reciprocal %62 {approx = true} : vector<1x32xf32> -> vector<1x32xf32>
    %64 = arith.mulf %62, %63 : vector<1x32xf32>
    %cst_39 = arith.constant 2.000000e+00 : f32
    %65 = vector.broadcast %cst_39 : f32 to vector<1x32xf32>
    %66 = arith.subf %65, %64 : vector<1x32xf32>
    %67 = arith.mulf %63, %66 : vector<1x32xf32>
    %68 = arith.mulf %61, %59 : vector<1x32xf32>
    %69 = arith.addf %51, %68 : vector<1x32xf32>
    %70 = arith.mulf %69, %67 : vector<1x32xf32>
    %71 = arith.index_cast %c1_i32 : i32 to index
    %c0_40 = arith.constant 0 : index
    %c0_41 = arith.constant 0 : index
    %72 = vector.load %arg14[%71, %c0_40, %c0_41] : memref<8x1x32xf32, #tpu.memory_space<vmem>>, vector<1x1x32xf32>
    %73 = vector.shape_cast %72 : vector<1x1x32xf32> to vector<1x32xf32>
    %74 = vector.shape_cast %70 : vector<1x32xf32> to vector<1x1x32xf32>
    tpu.vector_store %arg14[%71, %c0_40, %c0_41], %74 {strides = array<i32>} : memref<8x1x32xf32, #tpu.memory_space<vmem>>, vector<1x1x32xf32>,
    %75 = arith.mulf %25, %51 : vector<1x32xf32>
    %76 = arith.mulf %60, %59 : vector<1x32xf32>
    %77 = arith.addf %75, %76 : vector<1x32xf32>
    %78 = arith.mulf %25, %53 : vector<1x32xf32>
    %79 = arith.addf %78, %60 : vector<1x32xf32>
    %c2_i32 = arith.constant 2 : i32
    %80 = arith.index_cast %c2_i32 : i32 to index
    %c0_42 = arith.constant 0 : index
    %c0_43 = arith.constant 0 : index
    %81 = vector.load %arg12[%80, %c0_42, %c0_43] : memref<8x1x32xf32, #tpu.memory_space<vmem>>, vector<1x1x32xf32>
    %82 = vector.shape_cast %81 : vector<1x1x32xf32> to vector<1x32xf32>
    %83 = arith.index_cast %c2_i32 : i32 to index
    %c0_44 = arith.constant 0 : index
    %c0_45 = arith.constant 0 : index
    %84 = vector.load %arg13[%83, %c0_44, %c0_45] : memref<8x1x32xf32, #tpu.memory_space<vmem>>, vector<1x1x32xf32>
    %85 = vector.shape_cast %84 : vector<1x1x32xf32> to vector<1x32xf32>
    %86 = math.exp %82 : vector<1x32xf32>
    %87 = arith.mulf %21, %86 : vector<1x32xf32>
    %88 = arith.addf %79, %87 : vector<1x32xf32>
    %89 = tpu.reciprocal %88 {approx = true} : vector<1x32xf32> -> vector<1x32xf32>
    %90 = arith.mulf %88, %89 : vector<1x32xf32>
    %cst_46 = arith.constant 2.000000e+00 : f32
    %91 = vector.broadcast %cst_46 : f32 to vector<1x32xf32>
    %92 = arith.subf %91, %90 : vector<1x32xf32>
    %93 = arith.mulf %89, %92 : vector<1x32xf32>
    %94 = arith.mulf %87, %85 : vector<1x32xf32>
    %95 = arith.addf %77, %94 : vector<1x32xf32>
    %96 = arith.mulf %95, %93 : vector<1x32xf32>
    %97 = arith.index_cast %c2_i32 : i32 to index
    %c0_47 = arith.constant 0 : index
    %c0_48 = arith.constant 0 : index
    %98 = vector.load %arg14[%97, %c0_47, %c0_48] : memref<8x1x32xf32, #tpu.memory_space<vmem>>, vector<1x1x32xf32>
    %99 = vector.shape_cast %98 : vector<1x1x32xf32> to vector<1x32xf32>
    %100 = vector.shape_cast %96 : vector<1x32xf32> to vector<1x1x32xf32>
    tpu.vector_store %arg14[%97, %c0_47, %c0_48], %100 {strides = array<i32>} : memref<8x1x32xf32, #tpu.memory_space<vmem>>, vector<1x1x32xf32>,
    %101 = arith.mulf %25, %77 : vector<1x32xf32>
    %102 = arith.mulf %86, %85 : vector<1x32xf32>
    %103 = arith.addf %101, %102 : vector<1x32xf32>
    %104 = arith.mulf %25, %79 : vector<1x32xf32>
    %105 = arith.addf %104, %86 : vector<1x32xf32>
    %c3_i32 = arith.constant 3 : i32
    %106 = arith.index_cast %c3_i32 : i32 to index
    %c0_49 = arith.constant 0 : index
    %c0_50 = arith.constant 0 : index
    %107 = vector.load %arg12[%106, %c0_49, %c0_50] : memref<8x1x32xf32, #tpu.memory_space<vmem>>, vector<1x1x32xf32>
    %108 = vector.shape_cast %107 : vector<1x1x32xf32> to vector<1x32xf32>
    %109 = arith.index_cast %c3_i32 : i32 to index
    %c0_51 = arith.constant 0 : index
    %c0_52 = arith.constant 0 : index
    %110 = vector.load %arg13[%109, %c0_51, %c0_52] : memref<8x1x32xf32, #tpu.memory_space<vmem>>, vector<1x1x32xf32>
    %111 = vector.shape_cast %110 : vector<1x1x32xf32> to vector<1x32xf32>
    %112 = math.exp %108 : vector<1x32xf32>
    %113 = arith.mulf %21, %112 : vector<1x32xf32>
    %114 = arith.addf %105, %113 : vector<1x32xf32>
    %115 = tpu.reciprocal %114 {approx = true} : vector<1x32xf32> -> vector<1x32xf32>
    %116 = arith.mulf %114, %115 : vector<1x32xf32>
    %cst_53 = arith.constant 2.000000e+00 : f32
    %117 = vector.broadcast %cst_53 : f32 to vector<1x32xf32>
    %118 = arith.subf %117, %116 : vector<1x32xf32>
    %119 = arith.mulf %115, %118 : vector<1x32xf32>
    %120 = arith.mulf %113, %111 : vector<1x32xf32>
    %121 = arith.addf %103, %120 : vector<1x32xf32>
    %122 = arith.mulf %121, %119 : vector<1x32xf32>
    %123 = arith.index_cast %c3_i32 : i32 to index
    %c0_54 = arith.constant 0 : index
    %c0_55 = arith.constant 0 : index
    %124 = vector.load %arg14[%123, %c0_54, %c0_55] : memref<8x1x32xf32, #tpu.memory_space<vmem>>, vector<1x1x32xf32>
    %125 = vector.shape_cast %124 : vector<1x1x32xf32> to vector<1x32xf32>
    %126 = vector.shape_cast %122 : vector<1x32xf32> to vector<1x1x32xf32>
    tpu.vector_store %arg14[%123, %c0_54, %c0_55], %126 {strides = array<i32>} : memref<8x1x32xf32, #tpu.memory_space<vmem>>, vector<1x1x32xf32>,
    %127 = arith.mulf %25, %103 : vector<1x32xf32>
    %128 = arith.mulf %112, %111 : vector<1x32xf32>
    %129 = arith.addf %127, %128 : vector<1x32xf32>
    %130 = arith.mulf %25, %105 : vector<1x32xf32>
    %131 = arith.addf %130, %112 : vector<1x32xf32>
    %c4_i32 = arith.constant 4 : i32
    %132 = arith.index_cast %c4_i32 : i32 to index
    %c0_56 = arith.constant 0 : index
    %c0_57 = arith.constant 0 : index
    %133 = vector.load %arg12[%132, %c0_56, %c0_57] : memref<8x1x32xf32, #tpu.memory_space<vmem>>, vector<1x1x32xf32>
    %134 = vector.shape_cast %133 : vector<1x1x32xf32> to vector<1x32xf32>
    %135 = arith.index_cast %c4_i32 : i32 to index
    %c0_58 = arith.constant 0 : index
    %c0_59 = arith.constant 0 : index
    %136 = vector.load %arg13[%135, %c0_58, %c0_59] : memref<8x1x32xf32, #tpu.memory_space<vmem>>, vector<1x1x32xf32>
    %137 = vector.shape_cast %136 : vector<1x1x32xf32> to vector<1x32xf32>
    %138 = math.exp %134 : vector<1x32xf32>
    %139 = arith.mulf %21, %138 : vector<1x32xf32>
    %140 = arith.addf %131, %139 : vector<1x32xf32>
    %141 = tpu.reciprocal %140 {approx = true} : vector<1x32xf32> -> vector<1x32xf32>
    %142 = arith.mulf %140, %141 : vector<1x32xf32>
    %cst_60 = arith.constant 2.000000e+00 : f32
    %143 = vector.broadcast %cst_60 : f32 to vector<1x32xf32>
    %144 = arith.subf %143, %142 : vector<1x32xf32>
    %145 = arith.mulf %141, %144 : vector<1x32xf32>
    %146 = arith.mulf %139, %137 : vector<1x32xf32>
    %147 = arith.addf %129, %146 : vector<1x32xf32>
    %148 = arith.mulf %147, %145 : vector<1x32xf32>
    %149 = arith.index_cast %c4_i32 : i32 to index
    %c0_61 = arith.constant 0 : index
    %c0_62 = arith.constant 0 : index
    %150 = vector.load %arg14[%149, %c0_61, %c0_62] : memref<8x1x32xf32, #tpu.memory_space<vmem>>, vector<1x1x32xf32>
    %151 = vector.shape_cast %150 : vector<1x1x32xf32> to vector<1x32xf32>
    %152 = vector.shape_cast %148 : vector<1x32xf32> to vector<1x1x32xf32>
    tpu.vector_store %arg14[%149, %c0_61, %c0_62], %152 {strides = array<i32>} : memref<8x1x32xf32, #tpu.memory_space<vmem>>, vector<1x1x32xf32>,
    %153 = arith.mulf %25, %129 : vector<1x32xf32>
    %154 = arith.mulf %138, %137 : vector<1x32xf32>
    %155 = arith.addf %153, %154 : vector<1x32xf32>
    %156 = arith.mulf %25, %131 : vector<1x32xf32>
    %157 = arith.addf %156, %138 : vector<1x32xf32>
    %c5_i32 = arith.constant 5 : i32
    %158 = arith.index_cast %c5_i32 : i32 to index
    %c0_63 = arith.constant 0 : index
    %c0_64 = arith.constant 0 : index
    %159 = vector.load %arg12[%158, %c0_63, %c0_64] : memref<8x1x32xf32, #tpu.memory_space<vmem>>, vector<1x1x32xf32>
    %160 = vector.shape_cast %159 : vector<1x1x32xf32> to vector<1x32xf32>
    %161 = arith.index_cast %c5_i32 : i32 to index
    %c0_65 = arith.constant 0 : index
    %c0_66 = arith.constant 0 : index
    %162 = vector.load %arg13[%161, %c0_65, %c0_66] : memref<8x1x32xf32, #tpu.memory_space<vmem>>, vector<1x1x32xf32>
    %163 = vector.shape_cast %162 : vector<1x1x32xf32> to vector<1x32xf32>
    %164 = math.exp %160 : vector<1x32xf32>
    %165 = arith.mulf %21, %164 : vector<1x32xf32>
    %166 = arith.addf %157, %165 : vector<1x32xf32>
    %167 = tpu.reciprocal %166 {approx = true} : vector<1x32xf32> -> vector<1x32xf32>
    %168 = arith.mulf %166, %167 : vector<1x32xf32>
    %cst_67 = arith.constant 2.000000e+00 : f32
    %169 = vector.broadcast %cst_67 : f32 to vector<1x32xf32>
    %170 = arith.subf %169, %168 : vector<1x32xf32>
    %171 = arith.mulf %167, %170 : vector<1x32xf32>
    %172 = arith.mulf %165, %163 : vector<1x32xf32>
    %173 = arith.addf %155, %172 : vector<1x32xf32>
    %174 = arith.mulf %173, %171 : vector<1x32xf32>
    %175 = arith.index_cast %c5_i32 : i32 to index
    %c0_68 = arith.constant 0 : index
    %c0_69 = arith.constant 0 : index
    %176 = vector.load %arg14[%175, %c0_68, %c0_69] : memref<8x1x32xf32, #tpu.memory_space<vmem>>, vector<1x1x32xf32>
    %177 = vector.shape_cast %176 : vector<1x1x32xf32> to vector<1x32xf32>
    %178 = vector.shape_cast %174 : vector<1x32xf32> to vector<1x1x32xf32>
    tpu.vector_store %arg14[%175, %c0_68, %c0_69], %178 {strides = array<i32>} : memref<8x1x32xf32, #tpu.memory_space<vmem>>, vector<1x1x32xf32>,
    %179 = arith.mulf %25, %155 : vector<1x32xf32>
    %180 = arith.mulf %164, %163 : vector<1x32xf32>
    %181 = arith.addf %179, %180 : vector<1x32xf32>
    %182 = arith.mulf %25, %157 : vector<1x32xf32>
    %183 = arith.addf %182, %164 : vector<1x32xf32>
    %c6_i32 = arith.constant 6 : i32
    %184 = arith.index_cast %c6_i32 : i32 to index
    %c0_70 = arith.constant 0 : index
    %c0_71 = arith.constant 0 : index
    %185 = vector.load %arg12[%184, %c0_70, %c0_71] : memref<8x1x32xf32, #tpu.memory_space<vmem>>, vector<1x1x32xf32>
    %186 = vector.shape_cast %185 : vector<1x1x32xf32> to vector<1x32xf32>
    %187 = arith.index_cast %c6_i32 : i32 to index
    %c0_72 = arith.constant 0 : index
    %c0_73 = arith.constant 0 : index
    %188 = vector.load %arg13[%187, %c0_72, %c0_73] : memref<8x1x32xf32, #tpu.memory_space<vmem>>, vector<1x1x32xf32>
    %189 = vector.shape_cast %188 : vector<1x1x32xf32> to vector<1x32xf32>
    %190 = math.exp %186 : vector<1x32xf32>
    %191 = arith.mulf %21, %190 : vector<1x32xf32>
    %192 = arith.addf %183, %191 : vector<1x32xf32>
    %193 = tpu.reciprocal %192 {approx = true} : vector<1x32xf32> -> vector<1x32xf32>
    %194 = arith.mulf %192, %193 : vector<1x32xf32>
    %cst_74 = arith.constant 2.000000e+00 : f32
    %195 = vector.broadcast %cst_74 : f32 to vector<1x32xf32>
    %196 = arith.subf %195, %194 : vector<1x32xf32>
    %197 = arith.mulf %193, %196 : vector<1x32xf32>
    %198 = arith.mulf %191, %189 : vector<1x32xf32>
    %199 = arith.addf %181, %198 : vector<1x32xf32>
    %200 = arith.mulf %199, %197 : vector<1x32xf32>
    %201 = arith.index_cast %c6_i32 : i32 to index
    %c0_75 = arith.constant 0 : index
    %c0_76 = arith.constant 0 : index
    %202 = vector.load %arg14[%201, %c0_75, %c0_76] : memref<8x1x32xf32, #tpu.memory_space<vmem>>, vector<1x1x32xf32>
    %203 = vector.shape_cast %202 : vector<1x1x32xf32> to vector<1x32xf32>
    %204 = vector.shape_cast %200 : vector<1x32xf32> to vector<1x1x32xf32>
    tpu.vector_store %arg14[%201, %c0_75, %c0_76], %204 {strides = array<i32>} : memref<8x1x32xf32, #tpu.memory_space<vmem>>, vector<1x1x32xf32>,
    %205 = arith.mulf %25, %181 : vector<1x32xf32>
    %206 = arith.mulf %190, %189 : vector<1x32xf32>
    %207 = arith.addf %205, %206 : vector<1x32xf32>
    %208 = arith.mulf %25, %183 : vector<1x32xf32>
    %209 = arith.addf %208, %190 : vector<1x32xf32>
    %c7_i32 = arith.constant 7 : i32
    %210 = arith.index_cast %c7_i32 : i32 to index
    %c0_77 = arith.constant 0 : index
    %c0_78 = arith.constant 0 : index
    %211 = vector.load %arg12[%210, %c0_77, %c0_78] : memref<8x1x32xf32, #tpu.memory_space<vmem>>, vector<1x1x32xf32>
    %212 = vector.shape_cast %211 : vector<1x1x32xf32> to vector<1x32xf32>
    %213 = arith.index_cast %c7_i32 : i32 to index
    %c0_79 = arith.constant 0 : index
    %c0_80 = arith.constant 0 : index
    %214 = vector.load %arg13[%213, %c0_79, %c0_80] : memref<8x1x32xf32, #tpu.memory_space<vmem>>, vector<1x1x32xf32>
    %215 = vector.shape_cast %214 : vector<1x1x32xf32> to vector<1x32xf32>
    %216 = math.exp %212 : vector<1x32xf32>
    %217 = arith.mulf %21, %216 : vector<1x32xf32>
    %218 = arith.addf %209, %217 : vector<1x32xf32>
    %219 = tpu.reciprocal %218 {approx = true} : vector<1x32xf32> -> vector<1x32xf32>
    %220 = arith.mulf %218, %219 : vector<1x32xf32>
    %cst_81 = arith.constant 2.000000e+00 : f32
    %221 = vector.broadcast %cst_81 : f32 to vector<1x32xf32>
    %222 = arith.subf %221, %220 : vector<1x32xf32>
    %223 = arith.mulf %219, %222 : vector<1x32xf32>
    %224 = arith.mulf %217, %215 : vector<1x32xf32>
    %225 = arith.addf %207, %224 : vector<1x32xf32>
    %226 = arith.mulf %225, %223 : vector<1x32xf32>
    %227 = arith.index_cast %c7_i32 : i32 to index
    %c0_82 = arith.constant 0 : index
    %c0_83 = arith.constant 0 : index
    %228 = vector.load %arg14[%227, %c0_82, %c0_83] : memref<8x1x32xf32, #tpu.memory_space<vmem>>, vector<1x1x32xf32>
    %229 = vector.shape_cast %228 : vector<1x1x32xf32> to vector<1x32xf32>
    %230 = vector.shape_cast %226 : vector<1x32xf32> to vector<1x1x32xf32>
    tpu.vector_store %arg14[%227, %c0_82, %c0_83], %230 {strides = array<i32>} : memref<8x1x32xf32, #tpu.memory_space<vmem>>, vector<1x1x32xf32>,
    %231 = arith.mulf %25, %207 : vector<1x32xf32>
    %232 = arith.mulf %216, %215 : vector<1x32xf32>
    %233 = arith.addf %231, %232 : vector<1x32xf32>
    %234 = arith.mulf %25, %209 : vector<1x32xf32>
    %235 = arith.addf %234, %216 : vector<1x32xf32>
    %c8_i32 = arith.constant 8 : i32
    %c0_84 = arith.constant 0 : index
    %c0_85 = arith.constant 0 : index
    %236 = vector.load %arg15[%c0_84, %c0_85] : memref<1x32xf32, #tpu.memory_space<vmem>>, vector<1x32xf32>
    tpu.vector_store %arg15[%c0_84, %c0_85], %233 {strides = array<i32>} : memref<1x32xf32, #tpu.memory_space<vmem>>, vector<1x32xf32>,
    %c0_86 = arith.constant 0 : index
    %c0_87 = arith.constant 0 : index
    %237 = vector.load %arg16[%c0_86, %c0_87] : memref<1x32xf32, #tpu.memory_space<vmem>>, vector<1x32xf32>
    tpu.vector_store %arg16[%c0_86, %c0_87], %235 {strides = array<i32>} : memref<1x32xf32, #tpu.memory_space<vmem>>, vector<1x32xf32>,
    %c0_88 = arith.constant 0 : index
    %c0_89 = arith.constant 0 : index
    %c0_90 = arith.constant 0 : index
    %238 = vector.load %arg14[%c0_88, %c0_89, %c0_90] : memref<8x1x32xf32, #tpu.memory_space<vmem>>, vector<8x1x32xf32>
    %239 = arith.truncf %238 : vector<8x1x32xf32> to vector<8x1x32xbf16>
    %c0_91 = arith.constant 0 : index
    %c0_92 = arith.constant 0 : index
    %240 = vector.load %arg9[%c0_91, %c0_92] : memref<32x32xbf16, #tpu.memory_space<vmem>>, vector<32x32xbf16>
    %cst_93 = arith.constant dense<0.000000e+00> : vector<8x1x32xf32>
    %241 = tpu.matmul %239, %240, %cst_93 {dimension_numbers = #tpu.dot_dimension_numbers<[2], [0], [0, 1], [1], [0, 0, 0, 1, 1, 1], [], []>} : vector<8x1x32xbf16>, vector<32x32xbf16>, vector<8x1x32xf32> -> vector<8x1x32xf32>
    %c0_94 = arith.constant 0 : index
    %c0_95 = arith.constant 0 : index
    %242 = vector.load %arg10[%c0_94, %c0_95] : memref<1x32xf32, #tpu.memory_space<vmem>>, vector<1x32xf32>
    %243 = vector.shape_cast %242 : vector<1x32xf32> to vector<1x1x32xf32>
    %244 = vector.broadcast %243 : vector<1x1x32xf32> to vector<8x1x32xf32>
    %245 = arith.addf %241, %244 : vector<8x1x32xf32>
    %246 = tpu.transpose %245, [1, 0, 2] : vector<8x1x32xf32> -> vector<1x8x32xf32>
    %c0_96 = arith.constant 0 : index
    %c0_97 = arith.constant 0 : index
    %c0_98 = arith.constant 0 : index
    %247 = vector.load %arg11[%c0_96, %c0_97, %c0_98] : memref<1x8x32xf32, #tpu.memory_space<vmem>>, vector<1x8x32xf32>
    tpu.vector_store %arg11[%c0_96, %c0_97, %c0_98], %246 {strides = array<i32>} : memref<1x8x32xf32, #tpu.memory_space<vmem>>, vector<1x8x32xf32>,
    return
  }
  func.func @transform_0(%arg0: i32, %arg1: i32) -> (i32, i32, i32) {
    %c0_i32 = arith.constant 0 : i32
    %c0_i32_0 = arith.constant 0 : i32
    return %arg0, %arg1, %c0_i32 : i32, i32, i32
  }
  func.func @transform_1(%arg0: i32, %arg1: i32) -> (i32, i32) {
    %c0_i32 = arith.constant 0 : i32
    %c0_i32_0 = arith.constant 0 : i32
    %c0_i32_1 = arith.constant 0 : i32
    return %c0_i32, %c0_i32_0 : i32, i32
  }
  func.func @transform_2(%arg0: i32, %arg1: i32) -> (i32, i32) {
    %c0_i32 = arith.constant 0 : i32
    %c0_i32_0 = arith.constant 0 : i32
    %c0_i32_1 = arith.constant 0 : i32
    return %c0_i32, %c0_i32_0 : i32, i32
  }
  func.func @transform_3(%arg0: i32, %arg1: i32) -> (i32, i32) {
    %c0_i32 = arith.constant 0 : i32
    %c0_i32_0 = arith.constant 0 : i32
    %c0_i32_1 = arith.constant 0 : i32
    return %c0_i32, %c0_i32_0 : i32, i32
  }
  func.func @transform_4(%arg0: i32, %arg1: i32) -> (i32, i32) {
    %c0_i32 = arith.constant 0 : i32
    %c0_i32_0 = arith.constant 0 : i32
    %c0_i32_1 = arith.constant 0 : i32
    return %c0_i32, %c0_i32_0 : i32, i32
  }
  func.func @transform_5(%arg0: i32, %arg1: i32) -> (i32, i32) {
    %c0_i32 = arith.constant 0 : i32
    %c0_i32_0 = arith.constant 0 : i32
    %c0_i32_1 = arith.constant 0 : i32
    return %c0_i32, %c0_i32_0 : i32, i32
  }
  func.func @transform_6(%arg0: i32, %arg1: i32) -> (i32, i32) {
    %c0_i32 = arith.constant 0 : i32
    %c0_i32_0 = arith.constant 0 : i32
    %c0_i32_1 = arith.constant 0 : i32
    return %c0_i32, %c0_i32_0 : i32, i32
  }
  func.func @transform_7(%arg0: i32, %arg1: i32) -> (i32, i32) {
    %c0_i32 = arith.constant 0 : i32
    %c0_i32_0 = arith.constant 0 : i32
    %c0_i32_1 = arith.constant 0 : i32
    return %c0_i32, %c0_i32_0 : i32, i32
  }
  func.func @transform_8(%arg0: i32, %arg1: i32) -> (i32, i32) {
    %c0_i32 = arith.constant 0 : i32
    %c0_i32_0 = arith.constant 0 : i32
    %c0_i32_1 = arith.constant 0 : i32
    return %c0_i32, %c0_i32_0 : i32, i32
  }
  func.func @transform_9(%arg0: i32, %arg1: i32) -> (i32, i32, i32) {
    %c0_i32 = arith.constant 0 : i32
    %c0_i32_0 = arith.constant 0 : i32
    return %arg0, %arg1, %c0_i32 : i32, i32, i32
  }
}

</mosaic_0001>

<llo_original>
// kernel: tpu_custom_call.1
$region0: #{tpu_custom_call.1}
  #allocation0 [shape = 'u32[]', space=smem, size = 0x4, offset = 0x4, fixed_abs, tag = 'smem constant byte address 0x4 - core index']
  #allocation1 [shape = 'u32[72,128]{1,0:T(1,128)}', space=vmem, size = 0x9000, scoped, tag = 'internal scratch']
  #allocation2 [shape = 'f32[8,1,32]{2,1,0:T(1,128)}', space=vmem, size = 0x1000, scoped, tag = 'scratch operand']
  #allocation3 [shape = 'f32[8,1,32]{2,1,0:T(1,128)}', space=vmem, size = 0x1000, scoped, tag = 'scratch operand']
  #allocation4 [shape = 'f32[8,1,32]{2,1,0:T(1,128)}', space=vmem, size = 0x1000, scoped, tag = 'scratch operand']
  #allocation5 [shape = 'f32[1,32]{1,0:T(1,128)}', space=vmem, size = 0x200, scoped, tag = 'scratch operand']
  #allocation6 [shape = 'f32[1,32]{1,0:T(1,128)}', space=vmem, size = 0x200, scoped, tag = 'scratch operand']
  %s0 = inlined_call_operand.hbm [shape: f32[2,16,32], index: 0, kind: input, shape index: {}]
  %s1 = inlined_call_operand.hbm [shape: bf16[32,32], index: 1, kind: input, shape index: {}]
  %s2 = inlined_call_operand.vmem [shape: f32[1,32], index: 2, kind: input, shape index: {}]
  %s3 = inlined_call_operand.hbm [shape: bf16[32,32], index: 3, kind: input, shape index: {}]
  %s4 = inlined_call_operand.vmem [shape: f32[1,32], index: 4, kind: input, shape index: {}]
  %s5 = inlined_call_operand.vmem [shape: f32[1,32], index: 5, kind: input, shape index: {}]
  %s6 = inlined_call_operand.vmem [shape: f32[1,32], index: 6, kind: input, shape index: {}]
  %s7 = inlined_call_operand.hbm [shape: bf16[32,32], index: 7, kind: input, shape index: {}]
  %s8 = inlined_call_operand.vmem [shape: f32[1,32], index: 8, kind: input, shape index: {}]
  %s9 = inlined_call_operand.hbm [shape: f32[2,16,32], index: 9, kind: output, shape index: {}]
  %s10 = sld [smem:[#allocation0]]
  $region89: #{tpu_custom_call.1} parent=0
    _
  %s12 = ssub.s32 1, %s10
  %s13 = scalar_select 0, %s12, %s10
  $region1: #{tpu_custom_call.1} parent=0
    #allocation7 [shape = 'u8[8192]{0}', space=vmem, size = 0x2000, scoped, tag = 'input window, operand 0']
    #allocation8 [shape = 's32[2]{0}', space=sflag, size = 0x8, scoped, tag = 'scoped memory for tpu_custom_call.1']
    #allocation9 [shape = 's32[2]{0}', space=sflag, size = 0x8, scoped, tag = 'scoped memory for tpu_custom_call.1']
    #allocation10 [shape = 'u8[8192]{0}', space=vmem, size = 0x2000, scoped, tag = 'input window, operand 1, single buffered']
    #allocation11 [shape = 's32[1]{0}', space=sflag, size = 0x4, scoped, tag = 'scoped memory for tpu_custom_call.1']
    #allocation12 [shape = 'u8[8192]{0}', space=vmem, size = 0x2000, scoped, tag = 'input window, operand 3, single buffered']
    #allocation13 [shape = 'u8[8192]{0}', space=vmem, size = 0x2000, scoped, tag = 'input window, operand 7, single buffered']
    #allocation14 [shape = 's32[1]{0}', space=sflag, size = 0x4, scoped, tag = 'scoped memory for tpu_custom_call.1']
    #allocation15 [shape = 'u8[8192]{0}', space=vmem, size = 0x2000, scoped, tag = 'output window, operand 0']
    %14 = vsyncpa [#allocation8], 0
    %s15 = scalar_lea.sflag [#allocation8], 1
    %16 = vsyncpa %s15, 0
    %17 = vsyncpa [#allocation11], 0
    %18 = vsyncpa [#allocation14], 0
    %19 = vsyncpa [#allocation9], 0
    %s20 = scalar_lea.sflag [#allocation9], 1
    %21 = vsyncpa %s20, 0
    loop: start=0, step=1, limit=6
    $region2: #{tpu_custom_call.1} parent=1 // loop_pre_header
      _
    $region3: #{tpu_custom_call.1} parent=1 // loop_header
      %s23 = sphi 0, %s27
      %p24 = scmp.ge.s32.totalorder %s23, 6
      %s30 = sphi 0, %s42
      %s31 = sphi 0, %s38
      %s32 = sphi 0, %s30
      %s33 = sphi 0, %s31
      %s34 = sphi 0, %s32
      %s35 = sphi 0, %s33
      %s47 = sphi 0, %s49
      %s50 = sphi 0, %s47
      %s51 = sphi 0, %s50
      %s67 = sphi 0, %s51
      %s71 = sphi 0, %s71
      %s73 = sphi 0, %s71
      %s74 = sphi 0, %s73
      %s88 = sphi 0, %s74
      %s92 = sphi 0, %s92
      %s94 = sphi 0, %s92
      %s95 = sphi 0, %s94
      %s109 = sphi 0, %s95
      %s113 = sphi 0, %s113
      %s115 = sphi 0, %s113
      %s116 = sphi 0, %s115
      %s130 = sphi 0, %s116
      %s134 = sphi 0, %s134
      %s136 = sphi 0, %s134
      %s137 = sphi 0, %s136
      %s151 = sphi 0, %s137
      %s155 = sphi 0, %s155
      %s157 = sphi 0, %s155
      %s158 = sphi 0, %s157
      %s172 = sphi 0, %s158
      %s176 = sphi 0, %s176
      %s178 = sphi 0, %s176
      %s179 = sphi 0, %s178
      %s193 = sphi 0, %s179
      %s197 = sphi 0, %s197
      %s199 = sphi 0, %s197
      %s200 = sphi 0, %s199
      %s214 = sphi 0, %s200
      %s218 = sphi 0, %s218
      %s220 = sphi 0, %s218
      %s221 = sphi 0, %s220
      %s235 = sphi 0, %s221
      %s243 = sphi 0, %s245
      %s246 = sphi 0, %s243
      %s247 = sphi 0, %s246
      %s263 = sphi 0, %s247
    $region4: #{tpu_custom_call.1} parent=1 // loop_header_branch
      %26 = sbr.rel (%p24) target = $region8
    $region5: #{tpu_custom_call.1} parent=1 // loop_body
      %s28 = ssub.s32 %s23, 1
      %s29 = ssub.s32 %s23, 2
      %s36 = sadd.s32 1, %s31
      %p37 = scmp.ge.s32.totalorder %s36, 2
      %s38 = scalar_select %p37, 0, %s36
      %s39 = sadd.s32 1, %s30
      %s40 = scalar_select %p37, %s39, %s30
      %p41 = scmp.ge.s32.totalorder %s40, 2
      %s42 = scalar_select %p41, 0, %s40
      %s43 = ssub.s32 %s30, %s42
      %s44 = ssub.s32 %s31, %s38
      %s45 = sor.u32 %s43, %s44
      %p46 = scmp.eq.s32.totalorder %s45, 0
      %s48 = sadd.s32 %s47, 1
      %s49 = scalar_select %p46, %s47, %s48
      %p52 = pneg %p46
      %p53 = scmp.eq.s32.totalorder %s23, 3
      %p54 = por %p52, %p53
      %p55 = scmp.ne.s32.totalorder %s47, %s50
      %p56 = scmp.eq.s32.totalorder %s23, 0
      %p57 = por %p55, %p56
      %p58 = scmp.ne.s32.totalorder %s47, %s50
      %p59 = scmp.eq.s32.totalorder %s28, 3
      %p60 = por %p58, %p59
      %p61 = scmp.ne.s32.totalorder %s50, %s51
      %p62 = scmp.eq.s32.totalorder %s28, 0
      %p63 = por %p61, %p62
      %p64 = scmp.ne.s32.totalorder %s50, %s51
      %p65 = scmp.eq.s32.totalorder %s29, 3
      %p66 = por %p64, %p65
      %p68 = scmp.ne.s32.totalorder %s51, %s67
      %p69 = scmp.eq.s32.totalorder %s29, 0
      %p70 = por %p68, %p69
      %s72 = sadd.s32 %s71, 1
      %p75 = scmp.eq.s32.totalorder %s23, 3
      %p76 = scmp.ne.s32.totalorder %s71, %s73
      %p77 = scmp.eq.s32.totalorder %s23, 0
      %p78 = por %p76, %p77
      %p79 = scmp.ne.s32.totalorder %s71, %s73
      %p80 = scmp.eq.s32.totalorder %s28, 3
      %p81 = por %p79, %p80
      %p82 = scmp.ne.s32.totalorder %s73, %s74
      %p83 = scmp.eq.s32.totalorder %s28, 0
      %p84 = por %p82, %p83
      %p85 = scmp.ne.s32.totalorder %s73, %s74
      %p86 = scmp.eq.s32.totalorder %s29, 3
      %p87 = por %p85, %p86
      %p89 = scmp.ne.s32.totalorder %s74, %s88
      %p90 = scmp.eq.s32.totalorder %s29, 0
      %p91 = por %p89, %p90
      %s93 = sadd.s32 %s92, 1
      %p96 = scmp.eq.s32.totalorder %s23, 3
      %p97 = scmp.ne.s32.totalorder %s92, %s94
      %p98 = scmp.eq.s32.totalorder %s23, 0
      %p99 = por %p97, %p98
      %p100 = scmp.ne.s32.totalorder %s92, %s94
      %p101 = scmp.eq.s32.totalorder %s28, 3
      %p102 = por %p100, %p101
      %p103 = scmp.ne.s32.totalorder %s94, %s95
      %p104 = scmp.eq.s32.totalorder %s28, 0
      %p105 = por %p103, %p104
      %p106 = scmp.ne.s32.totalorder %s94, %s95
      %p107 = scmp.eq.s32.totalorder %s29, 3
      %p108 = por %p106, %p107
      %p110 = scmp.ne.s32.totalorder %s95, %s109
      %p111 = scmp.eq.s32.totalorder %s29, 0
      %p112 = por %p110, %p111
      %s114 = sadd.s32 %s113, 1
      %p117 = scmp.eq.s32.totalorder %s23, 3
      %p118 = scmp.ne.s32.totalorder %s113, %s115
      %p119 = scmp.eq.s32.totalorder %s23, 0
      %p120 = por %p118, %p119
      %p121 = scmp.ne.s32.totalorder %s113, %s115
      %p122 = scmp.eq.s32.totalorder %s28, 3
      %p123 = por %p121, %p122
      %p124 = scmp.ne.s32.totalorder %s115, %s116
      %p125 = scmp.eq.s32.totalorder %s28, 0
      %p126 = por %p124, %p125
      %p127 = scmp.ne.s32.totalorder %s115, %s116
      %p128 = scmp.eq.s32.totalorder %s29, 3
      %p129 = por %p127, %p128
      %p131 = scmp.ne.s32.totalorder %s116, %s130
      %p132 = scmp.eq.s32.totalorder %s29, 0
      %p133 = por %p131, %p132
      %s135 = sadd.s32 %s134, 1
      %p138 = scmp.eq.s32.totalorder %s23, 3
      %p139 = scmp.ne.s32.totalorder %s134, %s136
      %p140 = scmp.eq.s32.totalorder %s23, 0
      %p141 = por %p139, %p140
      %p142 = scmp.ne.s32.totalorder %s134, %s136
      %p143 = scmp.eq.s32.totalorder %s28, 3
      %p144 = por %p142, %p143
      %p145 = scmp.ne.s32.totalorder %s136, %s137
      %p146 = scmp.eq.s32.totalorder %s28, 0
      %p147 = por %p145, %p146
      %p148 = scmp.ne.s32.totalorder %s136, %s137
      %p149 = scmp.eq.s32.totalorder %s29, 3
      %p150 = por %p148, %p149
      %p152 = scmp.ne.s32.totalorder %s137, %s151
      %p153 = scmp.eq.s32.totalorder %s29, 0
      %p154 = por %p152, %p153
      %s156 = sadd.s32 %s155, 1
      %p159 = scmp.eq.s32.totalorder %s23, 3
      %p160 = scmp.ne.s32.totalorder %s155, %s157
      %p161 = scmp.eq.s32.totalorder %s23, 0
      %p162 = por %p160, %p161
      %p163 = scmp.ne.s32.totalorder %s155, %s157
      %p164 = scmp.eq.s32.totalorder %s28, 3
      %p165 = por %p163, %p164
      %p166 = scmp.ne.s32.totalorder %s157, %s158
      %p167 = scmp.eq.s32.totalorder %s28, 0
      %p168 = por %p166, %p167
      %p169 = scmp.ne.s32.totalorder %s157, %s158
      %p170 = scmp.eq.s32.totalorder %s29, 3
      %p171 = por %p169, %p170
      %p173 = scmp.ne.s32.totalorder %s158, %s172
      %p174 = scmp.eq.s32.totalorder %s29, 0
      %p175 = por %p173, %p174
      %s177 = sadd.s32 %s176, 1
      %p180 = scmp.eq.s32.totalorder %s23, 3
      %p181 = scmp.ne.s32.totalorder %s176, %s178
      %p182 = scmp.eq.s32.totalorder %s23, 0
      %p183 = por %p181, %p182
      %p184 = scmp.ne.s32.totalorder %s176, %s178
      %p185 = scmp.eq.s32.totalorder %s28, 3
      %p186 = por %p184, %p185
      %p187 = scmp.ne.s32.totalorder %s178, %s179
      %p188 = scmp.eq.s32.totalorder %s28, 0
      %p189 = por %p187, %p188
      %p190 = scmp.ne.s32.totalorder %s178, %s179
      %p191 = scmp.eq.s32.totalorder %s29, 3
      %p192 = por %p190, %p191
      %p194 = scmp.ne.s32.totalorder %s179, %s193
      %p195 = scmp.eq.s32.totalorder %s29, 0
      %p196 = por %p194, %p195
      %s198 = sadd.s32 %s197, 1
      %p201 = scmp.eq.s32.totalorder %s23, 3
      %p202 = scmp.ne.s32.totalorder %s197, %s199
      %p203 = scmp.eq.s32.totalorder %s23, 0
      %p204 = por %p202, %p203
      %p205 = scmp.ne.s32.totalorder %s197, %s199
      %p206 = scmp.eq.s32.totalorder %s28, 3
      %p207 = por %p205, %p206
      %p208 = scmp.ne.s32.totalorder %s199, %s200
      %p209 = scmp.eq.s32.totalorder %s28, 0
      %p210 = por %p208, %p209
      %p211 = scmp.ne.s32.totalorder %s199, %s200
      %p212 = scmp.eq.s32.totalorder %s29, 3
      %p213 = por %p211, %p212
      %p215 = scmp.ne.s32.totalorder %s200, %s214
      %p216 = scmp.eq.s32.totalorder %s29, 0
      %p217 = por %p215, %p216
      %s219 = sadd.s32 %s218, 1
      %p222 = scmp.eq.s32.totalorder %s23, 3
      %p223 = scmp.ne.s32.totalorder %s218, %s220
      %p224 = scmp.eq.s32.totalorder %s23, 0
      %p225 = por %p223, %p224
      %p226 = scmp.ne.s32.totalorder %s218, %s220
      %p227 = scmp.eq.s32.totalorder %s28, 3
      %p228 = por %p226, %p227
      %p229 = scmp.ne.s32.totalorder %s220, %s221
      %p230 = scmp.eq.s32.totalorder %s28, 0
      %p231 = por %p229, %p230
      %p232 = scmp.ne.s32.totalorder %s220, %s221
      %p233 = scmp.eq.s32.totalorder %s29, 3
      %p234 = por %p232, %p233
      %p236 = scmp.ne.s32.totalorder %s221, %s235
      %p237 = scmp.eq.s32.totalorder %s29, 0
      %p238 = por %p236, %p237
      %s239 = ssub.s32 %s30, %s42
      %s240 = ssub.s32 %s31, %s38
      %s241 = sor.u32 %s239, %s240
      %p242 = scmp.eq.s32.totalorder %s241, 0
      %s244 = sadd.s32 %s243, 1
      %s245 = scalar_select %p242, %s243, %s244
      %p248 = pneg %p242
      %p249 = scmp.eq.s32.totalorder %s23, 3
      %p250 = por %p248, %p249
      %p251 = scmp.ne.s32.totalorder %s243, %s246
      %p252 = scmp.eq.s32.totalorder %s23, 0
      %p253 = por %p251, %p252
      %p254 = scmp.ne.s32.totalorder %s243, %s246
      %p255 = scmp.eq.s32.totalorder %s28, 3
      %p256 = por %p254, %p255
      %p257 = scmp.ne.s32.totalorder %s246, %s247
      %p258 = scmp.eq.s32.totalorder %s28, 0
      %p259 = por %p257, %p258
      %p260 = scmp.ne.s32.totalorder %s246, %s247
      %p261 = scmp.eq.s32.totalorder %s29, 3
      %p262 = por %p260, %p261
      %p264 = scmp.ne.s32.totalorder %s247, %s263
      %p265 = scmp.eq.s32.totalorder %s29, 0
      %p266 = por %p264, %p265
      %p267 = scmp.le.s32.totalorder 1, %s23
      %p268 = scmp.lt.s32.totalorder %s23, 5
      %p269 = pnand %p267, %p268
      %p270 = pneg %p269
      // Predicated region
      $region9: #{tpu_custom_call.1} parent=5 // pred_check
        _
      $region10: #{tpu_custom_call.1} parent=5 // pred_check_branch
        %272 = sbr.rel (%p269) target = $region12
      $region11: #{tpu_custom_call.1} parent=5 // pred_region
        %s273 = ssub.s32 %s23, 1
        // Predicated region
        $region13: #{tpu_custom_call.1} parent=11 // pred_check
          %p274 = pneg %p84
        $region14: #{tpu_custom_call.1} parent=11 // pred_check_branch
          %276 = sbr.rel (%p274) target = $region16
        $region15: #{tpu_custom_call.1} parent=11 // pred_region
          %278 = vsyncadd [#allocation11], 0
          %s279 = sshll.u32 %s1, 4
          %s280 = int_to_ptr.hbm [resolvable:$true] %s279
          %s281 = sshll.u32 [#allocation10], 4
          %s282 = int_to_ptr.vmem [resolvable:$true] %s281
          %287 = dma.hbm_to_vmem [thread:$0]  %s280, 256, %s282, [#allocation11], 64, 64, 4
        $region16: #{tpu_custom_call.1} parent=11 // pred_fallthru
          _
        // Predicated region
        $region17: #{tpu_custom_call.1} parent=11 // pred_check
          %p288 = pneg %p105
        $region18: #{tpu_custom_call.1} parent=11 // pred_check_branch
          %290 = sbr.rel (%p288) target = $region20
        $region19: #{tpu_custom_call.1} parent=11 // pred_region
          _
        $region20: #{tpu_custom_call.1} parent=11 // pred_fallthru
          _
        // Predicated region
        $region21: #{tpu_custom_call.1} parent=11 // pred_check
          %p291 = pneg %p126
        $region22: #{tpu_custom_call.1} parent=11 // pred_check_branch
          %293 = sbr.rel (%p291) target = $region24
        $region23: #{tpu_custom_call.1} parent=11 // pred_region
          %295 = vsyncadd [#allocation11], 0
          %s296 = sshll.u32 %s3, 4
          %s297 = int_to_ptr.hbm [resolvable:$true] %s296
          %s298 = sshll.u32 [#allocation12], 4
          %s299 = int_to_ptr.vmem [resolvable:$true] %s298
          %304 = dma.hbm_to_vmem [thread:$0]  %s297, 256, %s299, [#allocation11], 64, 64, 4
        $region24: #{tpu_custom_call.1} parent=11 // pred_fallthru
          _
        // Predicated region
        $region25: #{tpu_custom_call.1} parent=11 // pred_check
          %p305 = pneg %p147
        $region26: #{tpu_custom_call.1} parent=11 // pred_check_branch
          %307 = sbr.rel (%p305) target = $region28
        $region27: #{tpu_custom_call.1} parent=11 // pred_region
          _
        $region28: #{tpu_custom_call.1} parent=11 // pred_fallthru
          _
        // Predicated region
        $region29: #{tpu_custom_call.1} parent=11 // pred_check
          %p308 = pneg %p168
        $region30: #{tpu_custom_call.1} parent=11 // pred_check_branch
          %310 = sbr.rel (%p308) target = $region32
        $region31: #{tpu_custom_call.1} parent=11 // pred_region
          _
        $region32: #{tpu_custom_call.1} parent=11 // pred_fallthru
          _
        // Predicated region
        $region33: #{tpu_custom_call.1} parent=11 // pred_check
          %p311 = pneg %p189
        $region34: #{tpu_custom_call.1} parent=11 // pred_check_branch
          %313 = sbr.rel (%p311) target = $region36
        $region35: #{tpu_custom_call.1} parent=11 // pred_region
          _
        $region36: #{tpu_custom_call.1} parent=11 // pred_fallthru
          _
        // Predicated region
        $region37: #{tpu_custom_call.1} parent=11 // pred_check
          %p314 = pneg %p210
        $region38: #{tpu_custom_call.1} parent=11 // pred_check_branch
          %316 = sbr.rel (%p314) target = $region40
        $region39: #{tpu_custom_call.1} parent=11 // pred_region
          %318 = vsyncadd [#allocation14], 0
          %s319 = sshll.u32 %s7, 4
          %s320 = int_to_ptr.hbm [resolvable:$true] %s319
          %s321 = sshll.u32 [#allocation13], 4
          %s322 = int_to_ptr.vmem [resolvable:$true] %s321
          %327 = dma.hbm_to_vmem [thread:$0]  %s320, 256, %s322, [#allocation14], 64, 64, 4
        $region40: #{tpu_custom_call.1} parent=11 // pred_fallthru
          _
        // Predicated region
        $region41: #{tpu_custom_call.1} parent=11 // pred_check
          %p328 = pneg %p231
        $region42: #{tpu_custom_call.1} parent=11 // pred_check_branch
          %330 = sbr.rel (%p328) target = $region44
        $region43: #{tpu_custom_call.1} parent=11 // pred_region
          _
        $region44: #{tpu_custom_call.1} parent=11 // pred_fallthru
          _
      $region12: #{tpu_custom_call.1} parent=5 // pred_fallthru
        _
      %p331 = scmp.lt.s32.totalorder %s23, 4
      // Predicated region
      $region45: #{tpu_custom_call.1} parent=5 // pred_check
        %p332 = pneg %p331
      $region46: #{tpu_custom_call.1} parent=5 // pred_check_branch
        %334 = sbr.rel (%p332) target = $region48
      $region47: #{tpu_custom_call.1} parent=5 // pred_region
        // Predicated region
        $region49: #{tpu_custom_call.1} parent=47 // pred_check
          %p335 = pneg %p57
        $region50: #{tpu_custom_call.1} parent=47 // pred_check_branch
          %337 = sbr.rel (%p335) target = $region52
        $region51: #{tpu_custom_call.1} parent=47 // pred_region
          %s338 = sand.u32 %s47, 1
          %s339 = scalar_lea.sflag [#allocation8], %s338
          %s340 = sand.u32 %s47, 1
          %s341 = smul.addr %s340, 8
          %s342 = scalar_lea.vmem [#allocation7], %s341
          %344 = vsyncadd %s339, 0
          %s345 = smul.addr %s30, 2
          %s346 = sadd.s32 %s31, %s345
          %s347 = smul.addr %s346, 8
          %s348 = scalar_lea.hbm %s0, %s347
          %s350 = sshll.u32 %s348, 4
          %s351 = int_to_ptr.hbm [resolvable:$true] %s350
          %s352 = sshll.u32 %s342, 4
          %s353 = int_to_ptr.vmem [resolvable:$true] %s352
          %355 = dma.hbm_to_vmem [thread:$0]  %s351, 128, %s353, %s339
        $region52: #{tpu_custom_call.1} parent=47 // pred_fallthru
          _
      $region48: #{tpu_custom_call.1} parent=5 // pred_fallthru
        _
      %p356 = scmp.le.s32.totalorder 1, %s23
      %p357 = scmp.lt.s32.totalorder %s23, 5
      %p358 = pnand %p356, %p357
      %p359 = pneg %p358
      // Predicated region
      $region53: #{tpu_custom_call.1} parent=5 // pred_check
        _
      $region54: #{tpu_custom_call.1} parent=5 // pred_check_branch
        %361 = sbr.rel (%p358) target = $region56
      $region55: #{tpu_custom_call.1} parent=5 // pred_region
        %s362 = ssub.s32 %s23, 1
        %s363 = sand.u32 %s50, 1
        %s364 = scalar_lea.sflag [#allocation8], %s363
        %s365 = sand.u32 %s50, 1
        %s366 = smul.addr %s365, 8
        %s367 = scalar_lea.vmem [#allocation7], %s366
        // Predicated region
        $region57: #{tpu_custom_call.1} parent=55 // pred_check
          %p368 = pneg %p63
        $region58: #{tpu_custom_call.1} parent=55 // pred_check_branch
          %370 = sbr.rel (%p368) target = $region60
        $region59: #{tpu_custom_call.1} parent=55 // pred_region
          %372 = dma.done %s364, 128
        $region60: #{tpu_custom_call.1} parent=55 // pred_fallthru
          _
        // Predicated region
        $region61: #{tpu_custom_call.1} parent=55 // pred_check
          %p373 = pneg %p84
        $region62: #{tpu_custom_call.1} parent=55 // pred_check_branch
          %375 = sbr.rel (%p373) target = $region64
        $region63: #{tpu_custom_call.1} parent=55 // pred_region
          %377 = dma.done [#allocation11], 256
        $region64: #{tpu_custom_call.1} parent=55 // pred_fallthru
          _
        // Predicated region
        $region65: #{tpu_custom_call.1} parent=55 // pred_check
          %p378 = pneg %p126
        $region66: #{tpu_custom_call.1} parent=55 // pred_check_branch
          %380 = sbr.rel (%p378) target = $region68
        $region67: #{tpu_custom_call.1} parent=55 // pred_region
          %382 = dma.done [#allocation11], 256
        $region68: #{tpu_custom_call.1} parent=55 // pred_fallthru
          _
        // Predicated region
        $region69: #{tpu_custom_call.1} parent=55 // pred_check
          %p383 = pneg %p210
        $region70: #{tpu_custom_call.1} parent=55 // pred_check_branch
          %385 = sbr.rel (%p383) target = $region72
        $region71: #{tpu_custom_call.1} parent=55 // pred_region
          %387 = dma.done [#allocation14], 256
        $region72: #{tpu_custom_call.1} parent=55 // pred_fallthru
          _
        %s388 = sand.u32 %s50, 1
        %s389 = scalar_lea.sflag [#allocation8], %s388
        %s390 = sand.u32 %s50, 1
        %s391 = smul.addr %s390, 8
        %s392 = scalar_lea.vmem [#allocation7], %s391
        %p393 = pneg %p63
        %p394 = pneg %p60
        %p395 = pneg %p84
        %p396 = pneg %p81
        %p397 = pneg %p105
        %p398 = pneg %p102
        %p399 = pneg %p126
        %p400 = pneg %p123
        %p401 = pneg %p147
        %p402 = pneg %p144
        %p403 = pneg %p168
        %p404 = pneg %p165
        %p405 = pneg %p189
        %p406 = pneg %p186
        %p407 = pneg %p210
        %p408 = pneg %p207
        %p409 = pneg %p231
        %p410 = pneg %p228
        %p411 = pneg %p259
        %p412 = pneg %p256
        %s413 = sand.u32 %s246, 1
        %s414 = scalar_lea.sflag [#allocation9], %s413
        %s415 = sand.u32 %s246, 1
        %s416 = smul.addr %s415, 8
        %s417 = scalar_lea.vmem [#allocation15], %s416
        %v419 = vld [vmem:[%s367] sm:$0xff]
        %v420 = vrot.slane %v419, 4
        %vm421 = vcmask 1047556
        %v422 = vsel %vm421, 0.0, %v420
        %v424 = vunpack.c.l.s4 1983009808
        %v425 = vunpack.c.0.s8 %v424
        %v426 = vperm.slane %v419, %v425
        %v428 = vunpack.c.l.s4 1983009808
        %v429 = vunpack.c.0.s8 %v428
        %v430 = vperm.slane %v422, %v429
        %v431 = vrot.slane %v426, 4
        %v432 = vsel %vm421, 0.0, %v431
        %v434 = vunpack.c.l.s4 1934713408
        %v435 = vunpack.c.0.s8 %v434
        %v436 = vperm.slane %v426, %v435
        %v438 = vunpack.c.l.s4 1934713408
        %v439 = vunpack.c.0.s8 %v438
        %v440 = vperm.slane %v432, %v439
        %v441 = vrot.slane %v430, 4
        %v442 = vsel %vm421, 0.0, %v441
        %v444 = vunpack.c.l.s4 1934713408
        %v445 = vunpack.c.0.s8 %v444
        %v446 = vperm.slane %v430, %v445
        %v448 = vunpack.c.l.s4 1934713408
        %v449 = vunpack.c.0.s8 %v448
        %v450 = vperm.slane %v442, %v449
        %v451 = vrot.slane %v436, 4
        %v452 = vsel %vm421, 0.0, %v451
        %v453 = vrot.slane %v440, 4
        %v454 = vsel %vm421, 0.0, %v453
        %v455 = vrot.slane %v446, 4
        %v456 = vsel %vm421, 0.0, %v455
        %v457 = vrot.slane %v450, 4
        %v458 = vsel %vm421, 0.0, %v457
        %v459 = vpack.c.bf16 %v436, %v436
        %v460 = vpack.c.bf16 %v452, %v452
        %v461 = vpack.c.bf16 %v440, %v440
        %v462 = vpack.c.bf16 %v454, %v454
        %v463 = vpack.c.bf16 %v446, %v446
        %v464 = vpack.c.bf16 %v456, %v456
        %v465 = vpack.c.bf16 %v450, %v450
        %v466 = vpack.c.bf16 %v458, %v458
        %v467 = vld [vmem:[#allocation10] sm:$0xf]
        %v468 = vld [vmem:[#allocation10 + $0x4] sm:$0xf]
        %v469 = vld [vmem:[#allocation10 + $0x8] sm:$0xf]
        %v470 = vld [vmem:[#allocation10 + $0xc] sm:$0xf]
        %v471 = vld [vmem:[%s2] sm:$0x1]
        %v480 = vunpack.c.l.b16 %v459
        %v481 = vunpack.c.l.b16 %v460
        %v482 = vunpack.c.l.b16 %v461
        %v483 = vunpack.c.l.b16 %v462
        %v484 = vunpack.c.l.b16 %v463
        %v485 = vunpack.c.l.b16 %v464
        %v486 = vunpack.c.l.b16 %v465
        %v487 = vunpack.c.l.b16 %v466
        %v488 = vpack.c.b16 %v480, %v480
        %v489 = vpack.c.b16 %v481, %v481
        %v490 = vpack.c.b16 %v482, %v482
        %v491 = vpack.c.b16 %v483, %v483
        %v492 = vpack.c.b16 %v484, %v484
        %v493 = vpack.c.b16 %v485, %v485
        %v494 = vpack.c.b16 %v486, %v486
        %v495 = vpack.c.b16 %v487, %v487
        %v496 = vunpack.c.l.b16 %v488
        %v497 = vunpack.c.l.b16 %v489
        %v498 = vunpack.c.l.b16 %v490
        %v499 = vunpack.c.l.b16 %v491
        %v500 = vunpack.c.l.b16 %v492
        %v501 = vunpack.c.l.b16 %v493
        %v502 = vunpack.c.l.b16 %v494
        %v503 = vunpack.c.l.b16 %v495
        %v504 = vrot.slane %v497, 7
        %vm505 = vcmask 1041409
        %v506 = vsel %vm505, %v504, %v496
        %v507 = vrot.slane %v498, 6
        %vm508 = vcmask 1042434
        %v509 = vsel %vm508, %v507, %v506
        %v510 = vrot.slane %v499, 5
        %vm511 = vcmask 1043459
        %v512 = vsel %vm511, %v510, %v509
        %v513 = vrot.slane %v500, 4
        %vm514 = vcmask 1044484
        %v515 = vsel %vm514, %v513, %v512
        %v516 = vrot.slane %v501, 3
        %vm517 = vcmask 1045509
        %v518 = vsel %vm517, %v516, %v515
        %v519 = vrot.slane %v502, 2
        %vm520 = vcmask 1046534
        %v521 = vsel %vm520, %v519, %v518
        %v522 = vrot.slane %v503, 1
        %vm523 = vcmask 1047559
        %v524 = vsel %vm523, %v522, %v521
        %v525 = vpack.c.b16 %v524, %v524
        %v530 = vunpack.c.l.b16 %v467
        %v531 = vunpack.c.l.b16 %v468
        %v532 = vunpack.c.l.b16 %v469
        %v533 = vunpack.c.l.b16 %v470
        %v534 = vpack.c.b16 %v531, %v530
        %v535 = vpack.c.b16 %v533, %v532
        %539 = vst [vmem:[#allocation1] ss:$9 sm:$0xff] %v471
        %s540 = scalar_lea.vmem [#allocation1], 1
        %541 = vst [vmem:[%s540] ss:$9 sm:$0xff] %v471
        %s542 = scalar_lea.vmem [#allocation1], 2
        %543 = vst [vmem:[%s542] ss:$9 sm:$0xff] %v471
        %s544 = scalar_lea.vmem [#allocation1], 3
        %545 = vst [vmem:[%s544] ss:$9 sm:$0xff] %v471
        %s546 = scalar_lea.vmem [#allocation1], 4
        %547 = vst [vmem:[%s546] ss:$9 sm:$0xff] %v471
        %s548 = scalar_lea.vmem [#allocation1], 5
        %549 = vst [vmem:[%s548] ss:$9 sm:$0xff] %v471
        %s550 = scalar_lea.vmem [#allocation1], 6
        %551 = vst [vmem:[%s550] ss:$9 sm:$0xff] %v471
        %s552 = scalar_lea.vmem [#allocation1], 7
        %553 = vst [vmem:[%s552] ss:$9 sm:$0xff] %v471
        %v554 = vld [vmem:[#allocation1] sm:$0xff]
        %vm556 = vcmask 261120
        %v558 = vsel %vm556, %v525, 0
        %560 = vmatpush.bf16.msra.mxu0 0
        %561 = vmatpush.bf16.msra.mxu0 0
        %562 = vmatpush.bf16.msra.mxu0 0
        %563 = vmatpush.bf16.msra.mxu0 0
        %564 = vmatpush.bf16.msra.mxu0 0
        %565 = vmatpush.bf16.msra.mxu0 0
        %566 = vmatpush.bf16.msra.mxu0 %v535
        %567 = vmatpush.bf16.msra.mxu0 %v534
        %568 = vmatmul.bf16.gmra.mxu0 %v558
        %v569 = vpop.f32.mrf.mxu0
        %v570 = vadd.f32 %v554, %v569
        %v571 = vpop.f32.mrf.mxu0
        %572 = vdwg.mxu0
        %v574 = vrot.slane %v570, 1
        %v575 = vrot.slane %v570, 2
        %v576 = vrot.slane %v570, 3
        %v577 = vrot.slane %v570, 4
        %v578 = vrot.slane %v570, 5
        %v579 = vrot.slane %v570, 6
        %v580 = vrot.slane %v570, 7
        %vm588 = vcmask 253952
        %589 = vst.msk [vmem:[#allocation2] sm:$0x1] %vm588, %v570
        %590 = vst.msk [vmem:[#allocation2 + $0x1] sm:$0x1] %vm588, %v574
        %591 = vst.msk [vmem:[#allocation2 + $0x2] sm:$0x1] %vm588, %v575
        %592 = vst.msk [vmem:[#allocation2 + $0x3] sm:$0x1] %vm588, %v576
        %593 = vst.msk [vmem:[#allocation2 + $0x4] sm:$0x1] %vm588, %v577
        %594 = vst.msk [vmem:[#allocation2 + $0x5] sm:$0x1] %vm588, %v578
        %595 = vst.msk [vmem:[#allocation2 + $0x6] sm:$0x1] %vm588, %v579
        %596 = vst.msk [vmem:[#allocation2 + $0x7] sm:$0x1] %vm588, %v580
        %v597 = vld [vmem:[#allocation12] sm:$0xf]
        %v598 = vld [vmem:[#allocation12 + $0x4] sm:$0xf]
        %v599 = vld [vmem:[#allocation12 + $0x8] sm:$0xf]
        %v600 = vld [vmem:[#allocation12 + $0xc] sm:$0xf]
        %v601 = vld [vmem:[%s4] sm:$0x1]
        %v606 = vunpack.c.l.b16 %v597
        %v607 = vunpack.c.l.b16 %v598
        %v608 = vunpack.c.l.b16 %v599
        %v609 = vunpack.c.l.b16 %v600
        %v610 = vpack.c.b16 %v607, %v606
        %v611 = vpack.c.b16 %v609, %v608
        %615 = vst [vmem:[#allocation1] ss:$9 sm:$0xff] %v601
        %s616 = scalar_lea.vmem [#allocation1], 1
        %617 = vst [vmem:[%s616] ss:$9 sm:$0xff] %v601
        %s618 = scalar_lea.vmem [#allocation1], 2
        %619 = vst [vmem:[%s618] ss:$9 sm:$0xff] %v601
        %s620 = scalar_lea.vmem [#allocation1], 3
        %621 = vst [vmem:[%s620] ss:$9 sm:$0xff] %v601
        %s622 = scalar_lea.vmem [#allocation1], 4
        %623 = vst [vmem:[%s622] ss:$9 sm:$0xff] %v601
        %s624 = scalar_lea.vmem [#allocation1], 5
        %625 = vst [vmem:[%s624] ss:$9 sm:$0xff] %v601
        %s626 = scalar_lea.vmem [#allocation1], 6
        %627 = vst [vmem:[%s626] ss:$9 sm:$0xff] %v601
        %s628 = scalar_lea.vmem [#allocation1], 7
        %629 = vst [vmem:[%s628] ss:$9 sm:$0xff] %v601
        %v630 = vld [vmem:[#allocation1] sm:$0xff]
        %632 = vmatpush.bf16.msra.mxu0 0
        %633 = vmatpush.bf16.msra.mxu0 0
        %634 = vmatpush.bf16.msra.mxu0 0
        %635 = vmatpush.bf16.msra.mxu0 0
        %636 = vmatpush.bf16.msra.mxu0 0
        %637 = vmatpush.bf16.msra.mxu0 0
        %638 = vmatpush.bf16.msra.mxu0 %v611
        %639 = vmatpush.bf16.msra.mxu0 %v610
        %640 = vmatmul.bf16.gmra.mxu0 %v558
        %v641 = vpop.f32.mrf.mxu0
        %v642 = vadd.f32 %v630, %v641
        %v643 = vpop.f32.mrf.mxu0
        %644 = vdwg.mxu0
        %v646 = vrot.slane %v642, 1
        %v647 = vrot.slane %v642, 2
        %v648 = vrot.slane %v642, 3
        %v649 = vrot.slane %v642, 4
        %v650 = vrot.slane %v642, 5
        %v651 = vrot.slane %v642, 6
        %v652 = vrot.slane %v642, 7
        %660 = vst.msk [vmem:[#allocation3] sm:$0x1] %vm588, %v642
        %661 = vst.msk [vmem:[#allocation3 + $0x1] sm:$0x1] %vm588, %v646
        %662 = vst.msk [vmem:[#allocation3 + $0x2] sm:$0x1] %vm588, %v647
        %663 = vst.msk [vmem:[#allocation3 + $0x3] sm:$0x1] %vm588, %v648
        %664 = vst.msk [vmem:[#allocation3 + $0x4] sm:$0x1] %vm588, %v649
        %665 = vst.msk [vmem:[#allocation3 + $0x5] sm:$0x1] %vm588, %v650
        %666 = vst.msk [vmem:[#allocation3 + $0x6] sm:$0x1] %vm588, %v651
        %667 = vst.msk [vmem:[#allocation3 + $0x7] sm:$0x1] %vm588, %v652
        %p668 = scmp.eq.s32.totalorder %s33, 0
        // Predicated region
        $region73: #{tpu_custom_call.1} parent=55 // pred_check
          %p669 = pneg %p668
        $region74: #{tpu_custom_call.1} parent=55 // pred_check_branch
          %671 = sbr.rel (%p669) target = $region76
        $region75: #{tpu_custom_call.1} parent=55 // pred_region
          %v672 = vld [vmem:[#allocation2] sm:$0x1]
          %v673 = vmul.f32 %v672, 1.442695
          %v674 = vpow.pop %v673
          %v675 = vld [vmem:[#allocation3] sm:$0x1]
          %v676 = vmul.f32 %v674, %v675
          %677 = vst.msk [vmem:[#allocation5] sm:$0x1] %vm588, %v676
          %678 = vst.msk [vmem:[#allocation6] sm:$0x1] %vm588, %v674
        $region76: #{tpu_custom_call.1} parent=55 // pred_fallthru
          _
        %v679 = vld [vmem:[%s5] sm:$0x1]
        %v680 = vmul.f32 %v679, 1.442695
        %v681 = vpow.pop %v680
        %v682 = vld [vmem:[%s6] sm:$0x1]
        %v683 = vsub.f32 0.0, %v682
        %v684 = vmul.f32 %v683, 1.442695
        %v685 = vpow.pop %v684
        %v686 = vld [vmem:[#allocation5] sm:$0x1]
        %v687 = vld [vmem:[#allocation6] sm:$0x1]
        %v688 = vld [vmem:[#allocation2] sm:$0x1]
        %v689 = vld [vmem:[#allocation3] sm:$0x1]
        %v690 = vmul.f32 %v688, 1.442695
        %v691 = vpow.pop %v690
        %v692 = vmul.f32 %v681, %v691
        %v693 = vadd.f32 %v687, %v692
        %v694 = vrcp.pop %v693
        %v695 = vmul.f32 %v693, %v694
        %v696 = vsub.f32 2.0, %v695
        %v697 = vmul.f32 %v694, %v696
        %v698 = vmul.f32 %v692, %v689
        %v699 = vadd.f32 %v686, %v698
        %v700 = vmul.f32 %v699, %v697
        %701 = vst.msk [vmem:[#allocation4] sm:$0x1] %vm588, %v700
        %v702 = vmul.f32 %v685, %v686
        %v703 = vmul.f32 %v691, %v689
        %v704 = vadd.f32 %v702, %v703
        %v705 = vmul.f32 %v685, %v687
        %v706 = vadd.f32 %v705, %v691
        %s707 = scalar_lea.vmem [#allocation2], 1
        %v708 = vld [vmem:[%s707] sm:$0x1]
        %s709 = scalar_lea.vmem [#allocation3], 1
        %v710 = vld [vmem:[%s709] sm:$0x1]
        %v711 = vmul.f32 %v708, 1.442695
        %v712 = vpow.pop %v711
        %v713 = vmul.f32 %v681, %v712
        %v714 = vadd.f32 %v706, %v713
        %v715 = vrcp.pop %v714
        %v716 = vmul.f32 %v714, %v715
        %v717 = vsub.f32 2.0, %v716
        %v718 = vmul.f32 %v715, %v717
        %v719 = vmul.f32 %v713, %v710
        %v720 = vadd.f32 %v704, %v719
        %v721 = vmul.f32 %v720, %v718
        %s722 = scalar_lea.vmem [#allocation4], 1
        %723 = vst.msk [vmem:[%s722] sm:$0x1] %vm588, %v721
        %v724 = vmul.f32 %v685, %v704
        %v725 = vmul.f32 %v712, %v710
        %v726 = vadd.f32 %v724, %v725
        %v727 = vmul.f32 %v685, %v706
        %v728 = vadd.f32 %v727, %v712
        %s729 = scalar_lea.vmem [#allocation2], 2
        %v730 = vld [vmem:[%s729] sm:$0x1]
        %s731 = scalar_lea.vmem [#allocation3], 2
        %v732 = vld [vmem:[%s731] sm:$0x1]
        %v733 = vmul.f32 %v730, 1.442695
        %v734 = vpow.pop %v733
        %v735 = vmul.f32 %v681, %v734
        %v736 = vadd.f32 %v728, %v735
        %v737 = vrcp.pop %v736
        %v738 = vmul.f32 %v736, %v737
        %v739 = vsub.f32 2.0, %v738
        %v740 = vmul.f32 %v737, %v739
        %v741 = vmul.f32 %v735, %v732
        %v742 = vadd.f32 %v726, %v741
        %v743 = vmul.f32 %v742, %v740
        %s744 = scalar_lea.vmem [#allocation4], 2
        %745 = vst.msk [vmem:[%s744] sm:$0x1] %vm588, %v743
        %v746 = vmul.f32 %v685, %v726
        %v747 = vmul.f32 %v734, %v732
        %v748 = vadd.f32 %v746, %v747
        %v749 = vmul.f32 %v685, %v728
        %v750 = vadd.f32 %v749, %v734
        %s751 = scalar_lea.vmem [#allocation2], 3
        %v752 = vld [vmem:[%s751] sm:$0x1]
        %s753 = scalar_lea.vmem [#allocation3], 3
        %v754 = vld [vmem:[%s753] sm:$0x1]
        %v755 = vmul.f32 %v752, 1.442695
        %v756 = vpow.pop %v755
        %v757 = vmul.f32 %v681, %v756
        %v758 = vadd.f32 %v750, %v757
        %v759 = vrcp.pop %v758
        %v760 = vmul.f32 %v758, %v759
        %v761 = vsub.f32 2.0, %v760
        %v762 = vmul.f32 %v759, %v761
        %v763 = vmul.f32 %v757, %v754
        %v764 = vadd.f32 %v748, %v763
        %v765 = vmul.f32 %v764, %v762
        %s766 = scalar_lea.vmem [#allocation4], 3
        %767 = vst.msk [vmem:[%s766] sm:$0x1] %vm588, %v765
        %v768 = vmul.f32 %v685, %v748
        %v769 = vmul.f32 %v756, %v754
        %v770 = vadd.f32 %v768, %v769
        %v771 = vmul.f32 %v685, %v750
        %v772 = vadd.f32 %v771, %v756
        %s773 = scalar_lea.vmem [#allocation2], 4
        %v774 = vld [vmem:[%s773] sm:$0x1]
        %s775 = scalar_lea.vmem [#allocation3], 4
        %v776 = vld [vmem:[%s775] sm:$0x1]
        %v777 = vmul.f32 %v774, 1.442695
        %v778 = vpow.pop %v777
        %v779 = vmul.f32 %v681, %v778
        %v780 = vadd.f32 %v772, %v779
        %v781 = vrcp.pop %v780
        %v782 = vmul.f32 %v780, %v781
        %v783 = vsub.f32 2.0, %v782
        %v784 = vmul.f32 %v781, %v783
        %v785 = vmul.f32 %v779, %v776
        %v786 = vadd.f32 %v770, %v785
        %v787 = vmul.f32 %v786, %v784
        %s788 = scalar_lea.vmem [#allocation4], 4
        %789 = vst.msk [vmem:[%s788] sm:$0x1] %vm588, %v787
        %v790 = vmul.f32 %v685, %v770
        %v791 = vmul.f32 %v778, %v776
        %v792 = vadd.f32 %v790, %v791
        %v793 = vmul.f32 %v685, %v772
        %v794 = vadd.f32 %v793, %v778
        %s795 = scalar_lea.vmem [#allocation2], 5
        %v796 = vld [vmem:[%s795] sm:$0x1]
        %s797 = scalar_lea.vmem [#allocation3], 5
        %v798 = vld [vmem:[%s797] sm:$0x1]
        %v799 = vmul.f32 %v796, 1.442695
        %v800 = vpow.pop %v799
        %v801 = vmul.f32 %v681, %v800
        %v802 = vadd.f32 %v794, %v801
        %v803 = vrcp.pop %v802
        %v804 = vmul.f32 %v802, %v803
        %v805 = vsub.f32 2.0, %v804
        %v806 = vmul.f32 %v803, %v805
        %v807 = vmul.f32 %v801, %v798
        %v808 = vadd.f32 %v792, %v807
        %v809 = vmul.f32 %v808, %v806
        %s810 = scalar_lea.vmem [#allocation4], 5
        %811 = vst.msk [vmem:[%s810] sm:$0x1] %vm588, %v809
        %v812 = vmul.f32 %v685, %v792
        %v813 = vmul.f32 %v800, %v798
        %v814 = vadd.f32 %v812, %v813
        %v815 = vmul.f32 %v685, %v794
        %v816 = vadd.f32 %v815, %v800
        %s817 = scalar_lea.vmem [#allocation2], 6
        %v818 = vld [vmem:[%s817] sm:$0x1]
        %s819 = scalar_lea.vmem [#allocation3], 6
        %v820 = vld [vmem:[%s819] sm:$0x1]
        %v821 = vmul.f32 %v818, 1.442695
        %v822 = vpow.pop %v821
        %v823 = vmul.f32 %v681, %v822
        %v824 = vadd.f32 %v816, %v823
        %v825 = vrcp.pop %v824
        %v826 = vmul.f32 %v824, %v825
        %v827 = vsub.f32 2.0, %v826
        %v828 = vmul.f32 %v825, %v827
        %v829 = vmul.f32 %v823, %v820
        %v830 = vadd.f32 %v814, %v829
        %v831 = vmul.f32 %v830, %v828
        %s832 = scalar_lea.vmem [#allocation4], 6
        %833 = vst.msk [vmem:[%s832] sm:$0x1] %vm588, %v831
        %v834 = vmul.f32 %v685, %v814
        %v835 = vmul.f32 %v822, %v820
        %v836 = vadd.f32 %v834, %v835
        %v837 = vmul.f32 %v685, %v816
        %v838 = vadd.f32 %v837, %v822
        %s839 = scalar_lea.vmem [#allocation2], 7
        %v840 = vld [vmem:[%s839] sm:$0x1]
        %s841 = scalar_lea.vmem [#allocation3], 7
        %v842 = vld [vmem:[%s841] sm:$0x1]
        %v843 = vmul.f32 %v840, 1.442695
        %v844 = vpow.pop %v843
        %v845 = vmul.f32 %v681, %v844
        %v846 = vadd.f32 %v838, %v845
        %v847 = vrcp.pop %v846
        %v848 = vmul.f32 %v846, %v847
        %v849 = vsub.f32 2.0, %v848
        %v850 = vmul.f32 %v847, %v849
        %v851 = vmul.f32 %v845, %v842
        %v852 = vadd.f32 %v836, %v851
        %v853 = vmul.f32 %v852, %v850
        %s854 = scalar_lea.vmem [#allocation4], 7
        %855 = vst.msk [vmem:[%s854] sm:$0x1] %vm588, %v853
        %v856 = vmul.f32 %v685, %v836
        %v857 = vmul.f32 %v844, %v842
        %v858 = vadd.f32 %v856, %v857
        %v859 = vmul.f32 %v685, %v838
        %v860 = vadd.f32 %v859, %v844
        %861 = vst.msk [vmem:[#allocation5] sm:$0x1] %vm588, %v858
        %862 = vst.msk [vmem:[#allocation6] sm:$0x1] %vm588, %v860
        %v863 = vld [vmem:[#allocation4] sm:$0x1]
        %v864 = vld [vmem:[#allocation4 + $0x1] sm:$0x1]
        %v865 = vld [vmem:[#allocation4 + $0x2] sm:$0x1]
        %v866 = vld [vmem:[#allocation4 + $0x3] sm:$0x1]
        %v867 = vld [vmem:[#allocation4 + $0x4] sm:$0x1]
        %v868 = vld [vmem:[#allocation4 + $0x5] sm:$0x1]
        %v869 = vld [vmem:[#allocation4 + $0x6] sm:$0x1]
        %v870 = vld [vmem:[#allocation4 + $0x7] sm:$0x1]
        %v871 = vpack.c.bf16 %v863, %v863
        %v872 = vpack.c.bf16 %v864, %v864
        %v873 = vpack.c.bf16 %v865, %v865
        %v874 = vpack.c.bf16 %v866, %v866
        %v875 = vpack.c.bf16 %v867, %v867
        %v876 = vpack.c.bf16 %v868, %v868
        %v877 = vpack.c.bf16 %v869, %v869
        %v878 = vpack.c.bf16 %v870, %v870
        %v879 = vld [vmem:[#allocation13] sm:$0xf]
        %v880 = vld [vmem:[#allocation13 + $0x4] sm:$0xf]
        %v881 = vld [vmem:[#allocation13 + $0x8] sm:$0xf]
        %v882 = vld [vmem:[#allocation13 + $0xc] sm:$0xf]
        %v883 = vld [vmem:[%s8] sm:$0x1]
        %v892 = vunpack.c.l.b16 %v871
        %v893 = vunpack.c.l.b16 %v872
        %v894 = vunpack.c.l.b16 %v873
        %v895 = vunpack.c.l.b16 %v874
        %v896 = vunpack.c.l.b16 %v875
        %v897 = vunpack.c.l.b16 %v876
        %v898 = vunpack.c.l.b16 %v877
        %v899 = vunpack.c.l.b16 %v878
        %v900 = vpack.c.b16 %v892, %v892
        %v901 = vpack.c.b16 %v893, %v893
        %v902 = vpack.c.b16 %v894, %v894
        %v903 = vpack.c.b16 %v895, %v895
        %v904 = vpack.c.b16 %v896, %v896
        %v905 = vpack.c.b16 %v897, %v897
        %v906 = vpack.c.b16 %v898, %v898
        %v907 = vpack.c.b16 %v899, %v899
        %v908 = vunpack.c.l.b16 %v900
        %v909 = vunpack.c.l.b16 %v901
        %v910 = vunpack.c.l.b16 %v902
        %v911 = vunpack.c.l.b16 %v903
        %v912 = vunpack.c.l.b16 %v904
        %v913 = vunpack.c.l.b16 %v905
        %v914 = vunpack.c.l.b16 %v906
        %v915 = vunpack.c.l.b16 %v907
        %v916 = vrot.slane %v909, 7
        %v917 = vsel %vm505, %v916, %v908
        %v918 = vrot.slane %v910, 6
        %v919 = vsel %vm508, %v918, %v917
        %v920 = vrot.slane %v911, 5
        %v921 = vsel %vm511, %v920, %v919
        %v922 = vrot.slane %v912, 4
        %v923 = vsel %vm514, %v922, %v921
        %v924 = vrot.slane %v913, 3
        %v925 = vsel %vm517, %v924, %v923
        %v926 = vrot.slane %v914, 2
        %v927 = vsel %vm520, %v926, %v925
        %v928 = vrot.slane %v915, 1
        %v929 = vsel %vm523, %v928, %v927
        %v930 = vpack.c.b16 %v929, %v929
        %v935 = vunpack.c.l.b16 %v879
        %v936 = vunpack.c.l.b16 %v880
        %v937 = vunpack.c.l.b16 %v881
        %v938 = vunpack.c.l.b16 %v882
        %v939 = vpack.c.b16 %v936, %v935
        %v940 = vpack.c.b16 %v938, %v937
        %944 = vst [vmem:[#allocation1] ss:$9 sm:$0xff] %v883
        %s945 = scalar_lea.vmem [#allocation1], 1
        %946 = vst [vmem:[%s945] ss:$9 sm:$0xff] %v883
        %s947 = scalar_lea.vmem [#allocation1], 2
        %948 = vst [vmem:[%s947] ss:$9 sm:$0xff] %v883
        %s949 = scalar_lea.vmem [#allocation1], 3
        %950 = vst [vmem:[%s949] ss:$9 sm:$0xff] %v883
        %s951 = scalar_lea.vmem [#allocation1], 4
        %952 = vst [vmem:[%s951] ss:$9 sm:$0xff] %v883
        %s953 = scalar_lea.vmem [#allocation1], 5
        %954 = vst [vmem:[%s953] ss:$9 sm:$0xff] %v883
        %s955 = scalar_lea.vmem [#allocation1], 6
        %956 = vst [vmem:[%s955] ss:$9 sm:$0xff] %v883
        %s957 = scalar_lea.vmem [#allocation1], 7
        %958 = vst [vmem:[%s957] ss:$9 sm:$0xff] %v883
        %v959 = vld [vmem:[#allocation1] sm:$0xff]
        %v962 = vsel %vm556, %v930, 0
        %964 = vmatpush.bf16.msra.mxu0 0
        %965 = vmatpush.bf16.msra.mxu0 0
        %966 = vmatpush.bf16.msra.mxu0 0
        %967 = vmatpush.bf16.msra.mxu0 0
        %968 = vmatpush.bf16.msra.mxu0 0
        %969 = vmatpush.bf16.msra.mxu0 0
        %970 = vmatpush.bf16.msra.mxu0 %v940
        %971 = vmatpush.bf16.msra.mxu0 %v939
        %972 = vmatmul.bf16.gmra.mxu0 %v962
        %v973 = vpop.f32.mrf.mxu0
        %v974 = vadd.f32 %v959, %v973
        %v975 = vpop.f32.mrf.mxu0
        %976 = vdwg.mxu0
        %v978 = vrot.slane %v974, 1
        %v979 = vrot.slane %v974, 2
        %v980 = vrot.slane %v974, 3
        %v981 = vrot.slane %v974, 4
        %v982 = vrot.slane %v974, 5
        %v983 = vrot.slane %v974, 6
        %v984 = vrot.slane %v974, 7
        %985 = vst [vmem:[#allocation1] ss:$9 sm:$0xff] %v974
        %s986 = scalar_lea.vmem [#allocation1], 1
        %987 = vst [vmem:[%s986] ss:$9 sm:$0xff] %v978
        %s988 = scalar_lea.vmem [#allocation1], 2
        %989 = vst [vmem:[%s988] ss:$9 sm:$0xff] %v979
        %s990 = scalar_lea.vmem [#allocation1], 3
        %991 = vst [vmem:[%s990] ss:$9 sm:$0xff] %v980
        %s992 = scalar_lea.vmem [#allocation1], 4
        %993 = vst [vmem:[%s992] ss:$9 sm:$0xff] %v981
        %s994 = scalar_lea.vmem [#allocation1], 5
        %995 = vst [vmem:[%s994] ss:$9 sm:$0xff] %v982
        %s996 = scalar_lea.vmem [#allocation1], 6
        %997 = vst [vmem:[%s996] ss:$9 sm:$0xff] %v983
        %s998 = scalar_lea.vmem [#allocation1], 7
        %999 = vst [vmem:[%s998] ss:$9 sm:$0xff] %v984
        %v1000 = vld [vmem:[#allocation1] sm:$0xff]
        %1002 = vst.msk [vmem:[%s417] sm:$0xff] %vm556, %v1000
        %s1003 = sand.u32 %s246, 1
        %s1004 = scalar_lea.sflag [#allocation9], %s1003
        %s1005 = sand.u32 %s246, 1
        %s1006 = smul.addr %s1005, 8
        %s1007 = scalar_lea.vmem [#allocation15], %s1006
        // Predicated region
        $region77: #{tpu_custom_call.1} parent=55 // pred_check
          %p1008 = pneg %p256
        $region78: #{tpu_custom_call.1} parent=55 // pred_check_branch
          %1010 = sbr.rel (%p1008) target = $region80
        $region79: #{tpu_custom_call.1} parent=55 // pred_region
          %1012 = vsyncadd %s1004, 0
          %s1013 = smul.addr %s32, 2
          %s1014 = sadd.s32 %s33, %s1013
          %s1015 = smul.addr %s1014, 8
          %s1016 = scalar_lea.hbm %s9, %s1015
          %s1018 = sshll.u32 %s1007, 4
          %s1019 = int_to_ptr.vmem [resolvable:$true] %s1018
          %s1020 = sshll.u32 %s1016, 4
          %s1021 = int_to_ptr.hbm [resolvable:$true] %s1020
          %1023 = dma.vmem_to_hbm [thread:$0]  %s1019, 128, %s1021, %s1004
        $region80: #{tpu_custom_call.1} parent=55 // pred_fallthru
          _
      $region56: #{tpu_custom_call.1} parent=5 // pred_fallthru
        _
      %p1024 = scmp.le.s32.totalorder 2, %s23
      // Predicated region
      $region81: #{tpu_custom_call.1} parent=5 // pred_check
        %p1025 = pneg %p1024
      $region82: #{tpu_custom_call.1} parent=5 // pred_check_branch
        %1027 = sbr.rel (%p1025) target = $region84
      $region83: #{tpu_custom_call.1} parent=5 // pred_region
        %s1028 = ssub.s32 %s23, 2
        // Predicated region
        $region85: #{tpu_custom_call.1} parent=83 // pred_check
          %p1029 = pneg %p262
        $region86: #{tpu_custom_call.1} parent=83 // pred_check_branch
          %1031 = sbr.rel (%p1029) target = $region88
        $region87: #{tpu_custom_call.1} parent=83 // pred_region
          %s1032 = sand.u32 %s247, 1
          %s1033 = scalar_lea.sflag [#allocation9], %s1032
          %s1034 = sand.u32 %s247, 1
          %s1035 = smul.addr %s1034, 8
          %s1036 = scalar_lea.vmem [#allocation15], %s1035
          %1038 = dma.done %s1033, 128
        $region88: #{tpu_custom_call.1} parent=83 // pred_fallthru
          _
      $region84: #{tpu_custom_call.1} parent=5 // pred_fallthru
        _
    $region6: #{tpu_custom_call.1} parent=1 // loop_footer
      %s27 = sadd.s32 1, %s23
    $region7: #{tpu_custom_call.1} parent=1 // loop_footer_branch
      %22 = sbr.rel target = $region3
    $region8: #{tpu_custom_call.1} parent=1 // loop_exit
      _
    %1039 = vsyncpa [#allocation8], 1
    %s1040 = scalar_lea.sflag [#allocation8], 1
    %1041 = vsyncpa %s1040, 1
    %1042 = vsyncpa [#allocation11], 1
    %1043 = vsyncpa [#allocation14], 1
    %1044 = vsyncpa [#allocation9], 1
    %s1045 = scalar_lea.sflag [#allocation9], 1
    %1046 = vsyncpa %s1045, 1

</llo_original>
